<compile_context>
chip_gen: v7x
topology: tpu7x:2x2x1
jax: 0.10.0
libtpu: 0.0.40
codegen_flags: <defaults>
</compile_context>

<pallas_src>
import math

import jax
import jax.numpy as jnp
from jax import lax
from jax.experimental import pallas as pl
from jax.experimental.pallas import tpu as pltpu


# ---- small, structurally-consistent model dims -----------------------------
T = 8                                   # sequence length ("steps")
V_ICD, V_MED, V_LAB = 64, 128, 32       # vocab sizes (small stand-ins)
E_ICD, E_MED, E_LAB, E_LAT = 16, 24, 16, 8
EMB = E_ICD + E_MED + E_LAB + E_LAT     # LSTM input size == hidden size (as in module)
HID = EMB

IN_DIM = V_ICD + V_MED + V_LAB + E_LAT  # fused input width (232)
IN_PAD = 256                            # padded contraction dim (fills MXU)
HID_PAD = 128                           # padded hidden: 1 vreg lane-row per gate


# ---------------------------------------------------------------------------
# Pallas kernel: fused embedding matmul + ReLU + unrolled LSTM recurrence
# ---------------------------------------------------------------------------
def _rnn_kernel(x_ref, w_emb_ref, b_emb_ref, w_ih_ref, w_hh_ref, b_g_ref,
                h_all_ref, c_ref):
    HP = h_all_ref.shape[1]       # padded hidden (128)
    Tn = h_all_ref.shape[0]

    # Fused embeddings (block-diagonal bf16 weight) + concat + ReLU:
    # one bf16 MXU matmul with f32 accumulation.
    emb = jnp.maximum(
        jnp.dot(x_ref[...], w_emb_ref[...], preferred_element_type=jnp.float32)
        + b_emb_ref[...],
        0.0)                                                      # [T, HP] f32

    # Input contribution (plus fused biases) to all 4 lane-aligned gates,
    # all steps at once (bf16 operands, f32 accumulate).
    xg = jnp.dot(emb.astype(jnp.bfloat16), w_ih_ref[...],
                 preferred_element_type=jnp.float32) + b_g_ref[...]  # [T, 4*HP]

    # Load the recurrent weight once; reuse the same value across all 8
    # unrolled matvecs so nothing re-streams it from the ref per step.
    w_hh = w_hh_ref[...]                                          # [HP, 4*HP] bf16

    h = jnp.zeros((1, HP), jnp.float32)
    c = jnp.zeros((1, HP), jnp.float32)
    # Fully unrolled recurrence (T is small & static): static slice starts, and
    # the scheduler can overlap EUP (sigmoid/tanh) / VPU / MXU across steps.
    # PyTorch gate order: i, f, g, o — each gate is exactly one 128-lane block.
    # Padded gate lanes stay exactly zero: w_ih/w_hh/b_g padded columns are 0,
    # so sigmoid(0)*0 / tanh(0) paths keep padded c,h lanes at 0.
    for t in range(Tn):
        g = xg[t:t + 1, :] + jnp.dot(h.astype(jnp.bfloat16), w_hh,
                                     preferred_element_type=jnp.float32)
        i = jax.nn.sigmoid(g[:, 0 * HP:1 * HP])
        f = jax.nn.sigmoid(g[:, 1 * HP:2 * HP])
        gg = jnp.tanh(g[:, 2 * HP:3 * HP])
        o = jax.nn.sigmoid(g[:, 3 * HP:4 * HP])
        c = f * c + i * gg
        h = o * jnp.tanh(c)
        h_all_ref[t:t + 1, :] = h        # lane-dense store, retires during loop
    c_ref[...] = c


_VMEM_SPEC = pl.BlockSpec(memory_space=pltpu.MemorySpace.VMEM)


# ---------------------------------------------------------------------------
# One-time parameter packing (hoisted out of the jitted forward)
# ---------------------------------------------------------------------------
def pack_params(p):
    """Pack PyTorch-layout params into padded, lane-aligned, bf16 TPU weights.

    Run ONCE at init; the jitted forward only sees the pre-packed arrays, so
    none of these scatters/transposes/pads execute per call.
    """
    # block-diagonal embedding weight [256, 128] (identity block for latent)
    r1, r2, r3 = V_ICD, V_ICD + V_MED, V_ICD + V_MED + V_LAB
    c1, c2, c3 = E_ICD, E_ICD + E_MED, E_ICD + E_MED + E_LAB
    w_emb = jnp.zeros((IN_PAD, HID_PAD), jnp.float32)
    w_emb = w_emb.at[0:r1, 0:c1].set(p["w_icd"].T)
    w_emb = w_emb.at[r1:r2, c1:c2].set(p["w_med"].T)
    w_emb = w_emb.at[r2:r3, c2:c3].set(p["w_lab"].T)
    w_emb = w_emb.at[r3:r3 + E_LAT, c3:c3 + E_LAT].set(
        jnp.eye(E_LAT, dtype=jnp.float32))
    b_emb = jnp.zeros((1, HID_PAD), jnp.float32)
    b_emb = b_emb.at[0, 0:c1].set(p["b_icd"])
    b_emb = b_emb.at[0, c1:c2].set(p["b_med"])
    b_emb = b_emb.at[0, c2:c3].set(p["b_lab"])
    # latent slice + padded lanes keep zero bias (latent is concatenated, not biased)

    # lane-aligned (128 per gate) LSTM weights / fused biases, zero-padded.
    # Padded columns MUST stay exactly zero (padded-lane invariance).
    w_ih = jnp.zeros((HID_PAD, 4 * HID_PAD), jnp.float32)
    w_hh = jnp.zeros((HID_PAD, 4 * HID_PAD), jnp.float32)
    b_g = jnp.zeros((1, 4 * HID_PAD), jnp.float32)
    bsum = p["b_ih"] + p["b_hh"]
    for k in range(4):                       # gates i, f, g, o
        w_ih = w_ih.at[:EMB, k * HID_PAD:k * HID_PAD + HID].set(
            p["w_ih"][k * HID:(k + 1) * HID, :].T)
        w_hh = w_hh.at[:HID, k * HID_PAD:k * HID_PAD + HID].set(
            p["w_hh"][k * HID:(k + 1) * HID, :].T)
        b_g = b_g.at[0, k * HID_PAD:k * HID_PAD + HID].set(
            bsum[k * HID:(k + 1) * HID])

    return {
        # bf16 MXU operands (zeros are exact in bf16 -> invariance preserved)
        "w_emb": w_emb.astype(jnp.bfloat16),
        "w_ih": w_ih.astype(jnp.bfloat16),
        "w_hh": w_hh.astype(jnp.bfloat16),
        # f32 biases / output head
        "b_emb": b_emb,
        "b_g": b_g,
        "w_out": p["w_out"],
        "b_out": p["b_out"],
    }


@jax.jit
def rnn_forward(x_icd, x_med, x_lab, x_lat, packed):
    """Returns (outputs [T], (h_n [1,1,H], c_n [1,1,H])) — matches PyTorch forward."""
    Tn = x_icd.shape[0]

    # fused, zero-padded input: concat(icd, med, lab, latent) -> [T, 256] bf16
    x = jnp.concatenate([x_icd, x_med, x_lab, x_lat], axis=1)      # [T, 232]
    x = jnp.pad(x, ((0, 0), (0, IN_PAD - IN_DIM))).astype(jnp.bfloat16)

    h_all, c_last = pl.pallas_call(
        _rnn_kernel,
        out_shape=(jax.ShapeDtypeStruct((Tn, HID_PAD), jnp.float32),  # hidden slab
                   jax.ShapeDtypeStruct((1, HID_PAD), jnp.float32)),  # c_n
        in_specs=[_VMEM_SPEC] * 6,
        out_specs=(_VMEM_SPEC, _VMEM_SPEC),
    )(x, packed["w_emb"], packed["b_emb"], packed["w_ih"], packed["w_hh"],
      packed["b_g"])

    # Output projection hoisted out of the recurrence (tiny [T,H]@[H,1]).
    # TODO(synk): nn.Dropout(0.05) is stochastic (train-mode only); applied here
    # as identity (eval-mode semantics).
    h_seq = h_all[:, :HID]
    out = h_seq @ packed["w_out"].T + packed["b_out"]              # [T, 1]
    h_n = h_seq[Tn - 1:Tn]                                         # [1, HID]
    c_n = c_last[:, :HID]                                          # [1, HID]
    return out[:, 0], (h_n[None], c_n[None])   # (num_layers, batch, H)


# ---------------------------------------------------------------------------
# Pure-JAX f32 reference (for correctness check)
# ---------------------------------------------------------------------------
def rnn_reference(x_icd, x_med, x_lab, x_lat, p):
    e = jnp.concatenate([x_icd @ p["w_icd"].T + p["b_icd"],
                         x_med @ p["w_med"].T + p["b_med"],
                         x_lab @ p["w_lab"].T + p["b_lab"],
                         x_lat], axis=1)
    e = jnp.maximum(e, 0.0)
    H = HID

    def step(carry, x_t):
        h, c = carry
        g = x_t @ p["w_ih"].T + p["b_ih"] + h @ p["w_hh"].T + p["b_hh"]
        i = jax.nn.sigmoid(g[0:H]); f = jax.nn.sigmoid(g[H:2 * H])
        gg = jnp.tanh(g[2 * H:3 * H]); o = jax.nn.sigmoid(g[3 * H:4 * H])
        c = f * c + i * gg
        h = o * jnp.tanh(c)
        y = h @ p["w_out"].T + p["b_out"]
        return (h, c), y

    (h, c), ys = lax.scan(step, (jnp.zeros(H), jnp.zeros(H)), e)
    return ys[:, 0], h, c


# ---------------------------------------------------------------------------
def init_params(key):
    def u(k, shape, fan_in):
        s = 1.0 / math.sqrt(fan_in)
        return jax.random.uniform(k, shape, jnp.float32, -s, s)

    ks = jax.random.split(key, 12)
    return {
        # nn.Linear convention: weight [out, in], bias [out]
        "w_icd": u(ks[0], (E_ICD, V_ICD), V_ICD), "b_icd": u(ks[1], (E_ICD,), V_ICD),
        "w_med": u(ks[2], (E_MED, V_MED), V_MED), "b_med": u(ks[3], (E_MED,), V_MED),
        "w_lab": u(ks[4], (E_LAB, V_LAB), V_LAB), "b_lab": u(ks[5], (E_LAB,), V_LAB),
        # nn.LSTM: weight_ih [4H, E], weight_hh [4H, H], biases [4H]
        "w_ih": u(ks[6], (4 * HID, EMB), HID), "w_hh": u(ks[7], (4 * HID, HID), HID),
        "b_ih": u(ks[8], (4 * HID,), HID), "b_hh": u(ks[9], (4 * HID,), HID),
        # output Linear(embsize, 1)
        "w_out": u(ks[10], (1, HID), HID), "b_out": u(ks[11], (1,), HID),
    }


if __name__ == "__main__":
    key = jax.random.PRNGKey(0)
    k_p, k_i, k_m, k_l, k_z = jax.random.split(key, 5)
    params = init_params(k_p)
    packed = jax.block_until_ready(pack_params(params))   # one-time packing

    x_icd = jax.random.normal(k_i, (T, V_ICD), jnp.float32)
    x_med = jax.random.normal(k_m, (T, V_MED), jnp.float32)
    x_lab = jax.random.normal(k_l, (T, V_LAB), jnp.float32)
    x_lat = jax.random.normal(k_z, (T, E_LAT), jnp.float32)

    out, (h_n, c_n) = rnn_forward(x_icd, x_med, x_lab, x_lat, packed)
    jax.block_until_ready((out, h_n, c_n))

    ref_out, ref_h, ref_c = rnn_reference(x_icd, x_med, x_lab, x_lat, params)
    assert out.shape == (T,)
    assert h_n.shape == (1, 1, HID) and c_n.shape == (1, 1, HID)
    # bf16 weights vs f32 reference -> relaxed tolerance (per review guidance)
    assert jnp.allclose(out, ref_out, rtol=2e-2, atol=2e-2)
    assert jnp.allclose(h_n[0, 0], ref_h, rtol=2e-2, atol=2e-2)
    assert jnp.allclose(c_n[0, 0], ref_c, rtol=2e-2, atol=2e-2)

    print("KERNEL_OK")
</pallas_src>

<mosaic_0001>
module attributes {stable_mosaic.version = 11 : i64} {
  func.func @_rnn_kernel(%arg0: memref<8x256xbf16, #tpu.memory_space<vmem>>, %arg1: memref<256x128xbf16, #tpu.memory_space<vmem>>, %arg2: memref<1x128xf32, #tpu.memory_space<vmem>>, %arg3: memref<128x512xbf16, #tpu.memory_space<vmem>>, %arg4: memref<128x512xbf16, #tpu.memory_space<vmem>>, %arg5: memref<1x512xf32, #tpu.memory_space<vmem>>, %arg6: memref<8x128xf32, #tpu.memory_space<vmem>>, %arg7: memref<1x128xf32, #tpu.memory_space<vmem>>) attributes {dimension_semantics = [], scalar_prefetch = 0 : i64, scratch_operands = 0 : i64, tpu.core_type = #tpu.core_type<tc>} {
    %c0 = arith.constant 0 : index
    %c0_0 = arith.constant 0 : index
    %0 = vector.load %arg0[%c0, %c0_0] : memref<8x256xbf16, #tpu.memory_space<vmem>>, vector<8x256xbf16>
    %c0_1 = arith.constant 0 : index
    %c0_2 = arith.constant 0 : index
    %1 = vector.load %arg1[%c0_1, %c0_2] : memref<256x128xbf16, #tpu.memory_space<vmem>>, vector<256x128xbf16>
    %cst = arith.constant dense<0.000000e+00> : vector<8x128xf32>
    %2 = tpu.matmul %0, %1, %cst {dimension_numbers = #tpu.dot_dimension_numbers<[1], [0], [0], [1], [0, 0, 1, 1], [], []>} : vector<8x256xbf16>, vector<256x128xbf16>, vector<8x128xf32> -> vector<8x128xf32>
    %c0_3 = arith.constant 0 : index
    %c0_4 = arith.constant 0 : index
    %3 = vector.load %arg2[%c0_3, %c0_4] : memref<1x128xf32, #tpu.memory_space<vmem>>, vector<1x128xf32>
    %4 = vector.broadcast %3 : vector<1x128xf32> to vector<8x128xf32>
    %5 = arith.addf %2, %4 : vector<8x128xf32>
    %cst_5 = arith.constant 0.000000e+00 : f32
    %6 = vector.broadcast %cst_5 : f32 to vector<8x128xf32>
    %7 = arith.maximumf %5, %6 : vector<8x128xf32>
    %8 = arith.truncf %7 : vector<8x128xf32> to vector<8x128xbf16>
    %c0_6 = arith.constant 0 : index
    %c0_7 = arith.constant 0 : index
    %9 = vector.load %arg3[%c0_6, %c0_7] : memref<128x512xbf16, #tpu.memory_space<vmem>>, vector<128x512xbf16>
    %cst_8 = arith.constant dense<0.000000e+00> : vector<8x512xf32>
    %10 = tpu.matmul %8, %9, %cst_8 {dimension_numbers = #tpu.dot_dimension_numbers<[1], [0], [0], [1], [0, 0, 1, 1], [], []>} : vector<8x128xbf16>, vector<128x512xbf16>, vector<8x512xf32> -> vector<8x512xf32>
    %c0_9 = arith.constant 0 : index
    %c0_10 = arith.constant 0 : index
    %11 = vector.load %arg5[%c0_9, %c0_10] : memref<1x512xf32, #tpu.memory_space<vmem>>, vector<1x512xf32>
    %12 = vector.broadcast %11 : vector<1x512xf32> to vector<8x512xf32>
    %13 = arith.addf %10, %12 : vector<8x512xf32>
    %c0_11 = arith.constant 0 : index
    %c0_12 = arith.constant 0 : index
    %14 = vector.load %arg4[%c0_11, %c0_12] : memref<128x512xbf16, #tpu.memory_space<vmem>>, vector<128x512xbf16>
    %cst_13 = arith.constant 0.000000e+00 : f32
    %15 = vector.broadcast %cst_13 : f32 to vector<1x128xf32>
    %cst_14 = arith.constant 0.000000e+00 : f32
    %16 = vector.broadcast %cst_14 : f32 to vector<1x128xf32>
    %17 = vector.extract_strided_slice %13 {offsets = [0, 0], sizes = [1, 512], strides = [1, 1]} : vector<8x512xf32> to vector<1x512xf32>
    %18 = arith.truncf %15 : vector<1x128xf32> to vector<1x128xbf16>
    %cst_15 = arith.constant dense<0.000000e+00> : vector<1x512xf32>
    %19 = tpu.matmul %18, %14, %cst_15 {dimension_numbers = #tpu.dot_dimension_numbers<[1], [0], [0], [1], [0, 0, 1, 1], [], []>} : vector<1x128xbf16>, vector<128x512xbf16>, vector<1x512xf32> -> vector<1x512xf32>
    %20 = arith.addf %17, %19 : vector<1x512xf32>
    %21 = vector.extract_strided_slice %20 {offsets = [0, 0], sizes = [1, 128], strides = [1, 1]} : vector<1x512xf32> to vector<1x128xf32>
    %22 = arith.negf %21 : vector<1x128xf32>
    %23 = math.exp %22 : vector<1x128xf32>
    %cst_16 = arith.constant 1.000000e+00 : f32
    %24 = vector.broadcast %cst_16 : f32 to vector<1x128xf32>
    %25 = arith.addf %24, %23 : vector<1x128xf32>
    %26 = arith.divf %24, %25 : vector<1x128xf32>
    %27 = vector.extract_strided_slice %20 {offsets = [0, 128], sizes = [1, 128], strides = [1, 1]} : vector<1x512xf32> to vector<1x128xf32>
    %28 = arith.negf %27 : vector<1x128xf32>
    %29 = math.exp %28 : vector<1x128xf32>
    %cst_17 = arith.constant 1.000000e+00 : f32
    %30 = vector.broadcast %cst_17 : f32 to vector<1x128xf32>
    %31 = arith.addf %30, %29 : vector<1x128xf32>
    %32 = arith.divf %30, %31 : vector<1x128xf32>
    %33 = vector.extract_strided_slice %20 {offsets = [0, 256], sizes = [1, 128], strides = [1, 1]} : vector<1x512xf32> to vector<1x128xf32>
    %34 = math.tanh %33 : vector<1x128xf32>
    %35 = vector.extract_strided_slice %20 {offsets = [0, 384], sizes = [1, 128], strides = [1, 1]} : vector<1x512xf32> to vector<1x128xf32>
    %36 = arith.negf %35 : vector<1x128xf32>
    %37 = math.exp %36 : vector<1x128xf32>
    %cst_18 = arith.constant 1.000000e+00 : f32
    %38 = vector.broadcast %cst_18 : f32 to vector<1x128xf32>
    %39 = arith.addf %38, %37 : vector<1x128xf32>
    %40 = arith.divf %38, %39 : vector<1x128xf32>
    %41 = arith.mulf %32, %16 : vector<1x128xf32>
    %42 = arith.mulf %26, %34 : vector<1x128xf32>
    %43 = arith.addf %41, %42 : vector<1x128xf32>
    %44 = math.tanh %43 : vector<1x128xf32>
    %45 = arith.mulf %40, %44 : vector<1x128xf32>
    %c0_19 = arith.constant 0 : index
    %c0_20 = arith.constant 0 : index
    %46 = vector.load %arg6[%c0_19, %c0_20] : memref<8x128xf32, #tpu.memory_space<vmem>>, vector<1x128xf32>
    tpu.vector_store %arg6[%c0_19, %c0_20], %45 {strides = array<i32>} : memref<8x128xf32, #tpu.memory_space<vmem>>, vector<1x128xf32>,
    %47 = vector.extract_strided_slice %13 {offsets = [1, 0], sizes = [1, 512], strides = [1, 1]} : vector<8x512xf32> to vector<1x512xf32>
    %48 = arith.truncf %45 : vector<1x128xf32> to vector<1x128xbf16>
    %cst_21 = arith.constant dense<0.000000e+00> : vector<1x512xf32>
    %49 = tpu.matmul %48, %14, %cst_21 {dimension_numbers = #tpu.dot_dimension_numbers<[1], [0], [0], [1], [0, 0, 1, 1], [], []>} : vector<1x128xbf16>, vector<128x512xbf16>, vector<1x512xf32> -> vector<1x512xf32>
    %50 = arith.addf %47, %49 : vector<1x512xf32>
    %51 = vector.extract_strided_slice %50 {offsets = [0, 0], sizes = [1, 128], strides = [1, 1]} : vector<1x512xf32> to vector<1x128xf32>
    %52 = arith.negf %51 : vector<1x128xf32>
    %53 = math.exp %52 : vector<1x128xf32>
    %cst_22 = arith.constant 1.000000e+00 : f32
    %54 = vector.broadcast %cst_22 : f32 to vector<1x128xf32>
    %55 = arith.addf %54, %53 : vector<1x128xf32>
    %56 = arith.divf %54, %55 : vector<1x128xf32>
    %57 = vector.extract_strided_slice %50 {offsets = [0, 128], sizes = [1, 128], strides = [1, 1]} : vector<1x512xf32> to vector<1x128xf32>
    %58 = arith.negf %57 : vector<1x128xf32>
    %59 = math.exp %58 : vector<1x128xf32>
    %cst_23 = arith.constant 1.000000e+00 : f32
    %60 = vector.broadcast %cst_23 : f32 to vector<1x128xf32>
    %61 = arith.addf %60, %59 : vector<1x128xf32>
    %62 = arith.divf %60, %61 : vector<1x128xf32>
    %63 = vector.extract_strided_slice %50 {offsets = [0, 256], sizes = [1, 128], strides = [1, 1]} : vector<1x512xf32> to vector<1x128xf32>
    %64 = math.tanh %63 : vector<1x128xf32>
    %65 = vector.extract_strided_slice %50 {offsets = [0, 384], sizes = [1, 128], strides = [1, 1]} : vector<1x512xf32> to vector<1x128xf32>
    %66 = arith.negf %65 : vector<1x128xf32>
    %67 = math.exp %66 : vector<1x128xf32>
    %cst_24 = arith.constant 1.000000e+00 : f32
    %68 = vector.broadcast %cst_24 : f32 to vector<1x128xf32>
    %69 = arith.addf %68, %67 : vector<1x128xf32>
    %70 = arith.divf %68, %69 : vector<1x128xf32>
    %71 = arith.mulf %62, %43 : vector<1x128xf32>
    %72 = arith.mulf %56, %64 : vector<1x128xf32>
    %73 = arith.addf %71, %72 : vector<1x128xf32>
    %74 = math.tanh %73 : vector<1x128xf32>
    %75 = arith.mulf %70, %74 : vector<1x128xf32>
    %c1 = arith.constant 1 : index
    %c0_25 = arith.constant 0 : index
    %76 = vector.load %arg6[%c1, %c0_25] : memref<8x128xf32, #tpu.memory_space<vmem>>, vector<1x128xf32>
    tpu.vector_store %arg6[%c1, %c0_25], %75 {strides = array<i32>} : memref<8x128xf32, #tpu.memory_space<vmem>>, vector<1x128xf32>,
    %77 = vector.extract_strided_slice %13 {offsets = [2, 0], sizes = [1, 512], strides = [1, 1]} : vector<8x512xf32> to vector<1x512xf32>
    %78 = arith.truncf %75 : vector<1x128xf32> to vector<1x128xbf16>
    %cst_26 = arith.constant dense<0.000000e+00> : vector<1x512xf32>
    %79 = tpu.matmul %78, %14, %cst_26 {dimension_numbers = #tpu.dot_dimension_numbers<[1], [0], [0], [1], [0, 0, 1, 1], [], []>} : vector<1x128xbf16>, vector<128x512xbf16>, vector<1x512xf32> -> vector<1x512xf32>
    %80 = arith.addf %77, %79 : vector<1x512xf32>
    %81 = vector.extract_strided_slice %80 {offsets = [0, 0], sizes = [1, 128], strides = [1, 1]} : vector<1x512xf32> to vector<1x128xf32>
    %82 = arith.negf %81 : vector<1x128xf32>
    %83 = math.exp %82 : vector<1x128xf32>
    %cst_27 = arith.constant 1.000000e+00 : f32
    %84 = vector.broadcast %cst_27 : f32 to vector<1x128xf32>
    %85 = arith.addf %84, %83 : vector<1x128xf32>
    %86 = arith.divf %84, %85 : vector<1x128xf32>
    %87 = vector.extract_strided_slice %80 {offsets = [0, 128], sizes = [1, 128], strides = [1, 1]} : vector<1x512xf32> to vector<1x128xf32>
    %88 = arith.negf %87 : vector<1x128xf32>
    %89 = math.exp %88 : vector<1x128xf32>
    %cst_28 = arith.constant 1.000000e+00 : f32
    %90 = vector.broadcast %cst_28 : f32 to vector<1x128xf32>
    %91 = arith.addf %90, %89 : vector<1x128xf32>
    %92 = arith.divf %90, %91 : vector<1x128xf32>
    %93 = vector.extract_strided_slice %80 {offsets = [0, 256], sizes = [1, 128], strides = [1, 1]} : vector<1x512xf32> to vector<1x128xf32>
    %94 = math.tanh %93 : vector<1x128xf32>
    %95 = vector.extract_strided_slice %80 {offsets = [0, 384], sizes = [1, 128], strides = [1, 1]} : vector<1x512xf32> to vector<1x128xf32>
    %96 = arith.negf %95 : vector<1x128xf32>
    %97 = math.exp %96 : vector<1x128xf32>
    %cst_29 = arith.constant 1.000000e+00 : f32
    %98 = vector.broadcast %cst_29 : f32 to vector<1x128xf32>
    %99 = arith.addf %98, %97 : vector<1x128xf32>
    %100 = arith.divf %98, %99 : vector<1x128xf32>
    %101 = arith.mulf %92, %73 : vector<1x128xf32>
    %102 = arith.mulf %86, %94 : vector<1x128xf32>
    %103 = arith.addf %101, %102 : vector<1x128xf32>
    %104 = math.tanh %103 : vector<1x128xf32>
    %105 = arith.mulf %100, %104 : vector<1x128xf32>
    %c2 = arith.constant 2 : index
    %c0_30 = arith.constant 0 : index
    %106 = vector.load %arg6[%c2, %c0_30] : memref<8x128xf32, #tpu.memory_space<vmem>>, vector<1x128xf32>
    tpu.vector_store %arg6[%c2, %c0_30], %105 {strides = array<i32>} : memref<8x128xf32, #tpu.memory_space<vmem>>, vector<1x128xf32>,
    %107 = vector.extract_strided_slice %13 {offsets = [3, 0], sizes = [1, 512], strides = [1, 1]} : vector<8x512xf32> to vector<1x512xf32>
    %108 = arith.truncf %105 : vector<1x128xf32> to vector<1x128xbf16>
    %cst_31 = arith.constant dense<0.000000e+00> : vector<1x512xf32>
    %109 = tpu.matmul %108, %14, %cst_31 {dimension_numbers = #tpu.dot_dimension_numbers<[1], [0], [0], [1], [0, 0, 1, 1], [], []>} : vector<1x128xbf16>, vector<128x512xbf16>, vector<1x512xf32> -> vector<1x512xf32>
    %110 = arith.addf %107, %109 : vector<1x512xf32>
    %111 = vector.extract_strided_slice %110 {offsets = [0, 0], sizes = [1, 128], strides = [1, 1]} : vector<1x512xf32> to vector<1x128xf32>
    %112 = arith.negf %111 : vector<1x128xf32>
    %113 = math.exp %112 : vector<1x128xf32>
    %cst_32 = arith.constant 1.000000e+00 : f32
    %114 = vector.broadcast %cst_32 : f32 to vector<1x128xf32>
    %115 = arith.addf %114, %113 : vector<1x128xf32>
    %116 = arith.divf %114, %115 : vector<1x128xf32>
    %117 = vector.extract_strided_slice %110 {offsets = [0, 128], sizes = [1, 128], strides = [1, 1]} : vector<1x512xf32> to vector<1x128xf32>
    %118 = arith.negf %117 : vector<1x128xf32>
    %119 = math.exp %118 : vector<1x128xf32>
    %cst_33 = arith.constant 1.000000e+00 : f32
    %120 = vector.broadcast %cst_33 : f32 to vector<1x128xf32>
    %121 = arith.addf %120, %119 : vector<1x128xf32>
    %122 = arith.divf %120, %121 : vector<1x128xf32>
    %123 = vector.extract_strided_slice %110 {offsets = [0, 256], sizes = [1, 128], strides = [1, 1]} : vector<1x512xf32> to vector<1x128xf32>
    %124 = math.tanh %123 : vector<1x128xf32>
    %125 = vector.extract_strided_slice %110 {offsets = [0, 384], sizes = [1, 128], strides = [1, 1]} : vector<1x512xf32> to vector<1x128xf32>
    %126 = arith.negf %125 : vector<1x128xf32>
    %127 = math.exp %126 : vector<1x128xf32>
    %cst_34 = arith.constant 1.000000e+00 : f32
    %128 = vector.broadcast %cst_34 : f32 to vector<1x128xf32>
    %129 = arith.addf %128, %127 : vector<1x128xf32>
    %130 = arith.divf %128, %129 : vector<1x128xf32>
    %131 = arith.mulf %122, %103 : vector<1x128xf32>
    %132 = arith.mulf %116, %124 : vector<1x128xf32>
    %133 = arith.addf %131, %132 : vector<1x128xf32>
    %134 = math.tanh %133 : vector<1x128xf32>
    %135 = arith.mulf %130, %134 : vector<1x128xf32>
    %c3 = arith.constant 3 : index
    %c0_35 = arith.constant 0 : index
    %136 = vector.load %arg6[%c3, %c0_35] : memref<8x128xf32, #tpu.memory_space<vmem>>, vector<1x128xf32>
    tpu.vector_store %arg6[%c3, %c0_35], %135 {strides = array<i32>} : memref<8x128xf32, #tpu.memory_space<vmem>>, vector<1x128xf32>,
    %137 = vector.extract_strided_slice %13 {offsets = [4, 0], sizes = [1, 512], strides = [1, 1]} : vector<8x512xf32> to vector<1x512xf32>
    %138 = arith.truncf %135 : vector<1x128xf32> to vector<1x128xbf16>
    %cst_36 = arith.constant dense<0.000000e+00> : vector<1x512xf32>
    %139 = tpu.matmul %138, %14, %cst_36 {dimension_numbers = #tpu.dot_dimension_numbers<[1], [0], [0], [1], [0, 0, 1, 1], [], []>} : vector<1x128xbf16>, vector<128x512xbf16>, vector<1x512xf32> -> vector<1x512xf32>
    %140 = arith.addf %137, %139 : vector<1x512xf32>
    %141 = vector.extract_strided_slice %140 {offsets = [0, 0], sizes = [1, 128], strides = [1, 1]} : vector<1x512xf32> to vector<1x128xf32>
    %142 = arith.negf %141 : vector<1x128xf32>
    %143 = math.exp %142 : vector<1x128xf32>
    %cst_37 = arith.constant 1.000000e+00 : f32
    %144 = vector.broadcast %cst_37 : f32 to vector<1x128xf32>
    %145 = arith.addf %144, %143 : vector<1x128xf32>
    %146 = arith.divf %144, %145 : vector<1x128xf32>
    %147 = vector.extract_strided_slice %140 {offsets = [0, 128], sizes = [1, 128], strides = [1, 1]} : vector<1x512xf32> to vector<1x128xf32>
    %148 = arith.negf %147 : vector<1x128xf32>
    %149 = math.exp %148 : vector<1x128xf32>
    %cst_38 = arith.constant 1.000000e+00 : f32
    %150 = vector.broadcast %cst_38 : f32 to vector<1x128xf32>
    %151 = arith.addf %150, %149 : vector<1x128xf32>
    %152 = arith.divf %150, %151 : vector<1x128xf32>
    %153 = vector.extract_strided_slice %140 {offsets = [0, 256], sizes = [1, 128], strides = [1, 1]} : vector<1x512xf32> to vector<1x128xf32>
    %154 = math.tanh %153 : vector<1x128xf32>
    %155 = vector.extract_strided_slice %140 {offsets = [0, 384], sizes = [1, 128], strides = [1, 1]} : vector<1x512xf32> to vector<1x128xf32>
    %156 = arith.negf %155 : vector<1x128xf32>
    %157 = math.exp %156 : vector<1x128xf32>
    %cst_39 = arith.constant 1.000000e+00 : f32
    %158 = vector.broadcast %cst_39 : f32 to vector<1x128xf32>
    %159 = arith.addf %158, %157 : vector<1x128xf32>
    %160 = arith.divf %158, %159 : vector<1x128xf32>
    %161 = arith.mulf %152, %133 : vector<1x128xf32>
    %162 = arith.mulf %146, %154 : vector<1x128xf32>
    %163 = arith.addf %161, %162 : vector<1x128xf32>
    %164 = math.tanh %163 : vector<1x128xf32>
    %165 = arith.mulf %160, %164 : vector<1x128xf32>
    %c4 = arith.constant 4 : index
    %c0_40 = arith.constant 0 : index
    %166 = vector.load %arg6[%c4, %c0_40] : memref<8x128xf32, #tpu.memory_space<vmem>>, vector<1x128xf32>
    tpu.vector_store %arg6[%c4, %c0_40], %165 {strides = array<i32>} : memref<8x128xf32, #tpu.memory_space<vmem>>, vector<1x128xf32>,
    %167 = vector.extract_strided_slice %13 {offsets = [5, 0], sizes = [1, 512], strides = [1, 1]} : vector<8x512xf32> to vector<1x512xf32>
    %168 = arith.truncf %165 : vector<1x128xf32> to vector<1x128xbf16>
    %cst_41 = arith.constant dense<0.000000e+00> : vector<1x512xf32>
    %169 = tpu.matmul %168, %14, %cst_41 {dimension_numbers = #tpu.dot_dimension_numbers<[1], [0], [0], [1], [0, 0, 1, 1], [], []>} : vector<1x128xbf16>, vector<128x512xbf16>, vector<1x512xf32> -> vector<1x512xf32>
    %170 = arith.addf %167, %169 : vector<1x512xf32>
    %171 = vector.extract_strided_slice %170 {offsets = [0, 0], sizes = [1, 128], strides = [1, 1]} : vector<1x512xf32> to vector<1x128xf32>
    %172 = arith.negf %171 : vector<1x128xf32>
    %173 = math.exp %172 : vector<1x128xf32>
    %cst_42 = arith.constant 1.000000e+00 : f32
    %174 = vector.broadcast %cst_42 : f32 to vector<1x128xf32>
    %175 = arith.addf %174, %173 : vector<1x128xf32>
    %176 = arith.divf %174, %175 : vector<1x128xf32>
    %177 = vector.extract_strided_slice %170 {offsets = [0, 128], sizes = [1, 128], strides = [1, 1]} : vector<1x512xf32> to vector<1x128xf32>
    %178 = arith.negf %177 : vector<1x128xf32>
    %179 = math.exp %178 : vector<1x128xf32>
    %cst_43 = arith.constant 1.000000e+00 : f32
    %180 = vector.broadcast %cst_43 : f32 to vector<1x128xf32>
    %181 = arith.addf %180, %179 : vector<1x128xf32>
    %182 = arith.divf %180, %181 : vector<1x128xf32>
    %183 = vector.extract_strided_slice %170 {offsets = [0, 256], sizes = [1, 128], strides = [1, 1]} : vector<1x512xf32> to vector<1x128xf32>
    %184 = math.tanh %183 : vector<1x128xf32>
    %185 = vector.extract_strided_slice %170 {offsets = [0, 384], sizes = [1, 128], strides = [1, 1]} : vector<1x512xf32> to vector<1x128xf32>
    %186 = arith.negf %185 : vector<1x128xf32>
    %187 = math.exp %186 : vector<1x128xf32>
    %cst_44 = arith.constant 1.000000e+00 : f32
    %188 = vector.broadcast %cst_44 : f32 to vector<1x128xf32>
    %189 = arith.addf %188, %187 : vector<1x128xf32>
    %190 = arith.divf %188, %189 : vector<1x128xf32>
    %191 = arith.mulf %182, %163 : vector<1x128xf32>
    %192 = arith.mulf %176, %184 : vector<1x128xf32>
    %193 = arith.addf %191, %192 : vector<1x128xf32>
    %194 = math.tanh %193 : vector<1x128xf32>
    %195 = arith.mulf %190, %194 : vector<1x128xf32>
    %c5 = arith.constant 5 : index
    %c0_45 = arith.constant 0 : index
    %196 = vector.load %arg6[%c5, %c0_45] : memref<8x128xf32, #tpu.memory_space<vmem>>, vector<1x128xf32>
    tpu.vector_store %arg6[%c5, %c0_45], %195 {strides = array<i32>} : memref<8x128xf32, #tpu.memory_space<vmem>>, vector<1x128xf32>,
    %197 = vector.extract_strided_slice %13 {offsets = [6, 0], sizes = [1, 512], strides = [1, 1]} : vector<8x512xf32> to vector<1x512xf32>
    %198 = arith.truncf %195 : vector<1x128xf32> to vector<1x128xbf16>
    %cst_46 = arith.constant dense<0.000000e+00> : vector<1x512xf32>
    %199 = tpu.matmul %198, %14, %cst_46 {dimension_numbers = #tpu.dot_dimension_numbers<[1], [0], [0], [1], [0, 0, 1, 1], [], []>} : vector<1x128xbf16>, vector<128x512xbf16>, vector<1x512xf32> -> vector<1x512xf32>
    %200 = arith.addf %197, %199 : vector<1x512xf32>
    %201 = vector.extract_strided_slice %200 {offsets = [0, 0], sizes = [1, 128], strides = [1, 1]} : vector<1x512xf32> to vector<1x128xf32>
    %202 = arith.negf %201 : vector<1x128xf32>
    %203 = math.exp %202 : vector<1x128xf32>
    %cst_47 = arith.constant 1.000000e+00 : f32
    %204 = vector.broadcast %cst_47 : f32 to vector<1x128xf32>
    %205 = arith.addf %204, %203 : vector<1x128xf32>
    %206 = arith.divf %204, %205 : vector<1x128xf32>
    %207 = vector.extract_strided_slice %200 {offsets = [0, 128], sizes = [1, 128], strides = [1, 1]} : vector<1x512xf32> to vector<1x128xf32>
    %208 = arith.negf %207 : vector<1x128xf32>
    %209 = math.exp %208 : vector<1x128xf32>
    %cst_48 = arith.constant 1.000000e+00 : f32
    %210 = vector.broadcast %cst_48 : f32 to vector<1x128xf32>
    %211 = arith.addf %210, %209 : vector<1x128xf32>
    %212 = arith.divf %210, %211 : vector<1x128xf32>
    %213 = vector.extract_strided_slice %200 {offsets = [0, 256], sizes = [1, 128], strides = [1, 1]} : vector<1x512xf32> to vector<1x128xf32>
    %214 = math.tanh %213 : vector<1x128xf32>
    %215 = vector.extract_strided_slice %200 {offsets = [0, 384], sizes = [1, 128], strides = [1, 1]} : vector<1x512xf32> to vector<1x128xf32>
    %216 = arith.negf %215 : vector<1x128xf32>
    %217 = math.exp %216 : vector<1x128xf32>
    %cst_49 = arith.constant 1.000000e+00 : f32
    %218 = vector.broadcast %cst_49 : f32 to vector<1x128xf32>
    %219 = arith.addf %218, %217 : vector<1x128xf32>
    %220 = arith.divf %218, %219 : vector<1x128xf32>
    %221 = arith.mulf %212, %193 : vector<1x128xf32>
    %222 = arith.mulf %206, %214 : vector<1x128xf32>
    %223 = arith.addf %221, %222 : vector<1x128xf32>
    %224 = math.tanh %223 : vector<1x128xf32>
    %225 = arith.mulf %220, %224 : vector<1x128xf32>
    %c6 = arith.constant 6 : index
    %c0_50 = arith.constant 0 : index
    %226 = vector.load %arg6[%c6, %c0_50] : memref<8x128xf32, #tpu.memory_space<vmem>>, vector<1x128xf32>
    tpu.vector_store %arg6[%c6, %c0_50], %225 {strides = array<i32>} : memref<8x128xf32, #tpu.memory_space<vmem>>, vector<1x128xf32>,
    %227 = vector.extract_strided_slice %13 {offsets = [7, 0], sizes = [1, 512], strides = [1, 1]} : vector<8x512xf32> to vector<1x512xf32>
    %228 = arith.truncf %225 : vector<1x128xf32> to vector<1x128xbf16>
    %cst_51 = arith.constant dense<0.000000e+00> : vector<1x512xf32>
    %229 = tpu.matmul %228, %14, %cst_51 {dimension_numbers = #tpu.dot_dimension_numbers<[1], [0], [0], [1], [0, 0, 1, 1], [], []>} : vector<1x128xbf16>, vector<128x512xbf16>, vector<1x512xf32> -> vector<1x512xf32>
    %230 = arith.addf %227, %229 : vector<1x512xf32>
    %231 = vector.extract_strided_slice %230 {offsets = [0, 0], sizes = [1, 128], strides = [1, 1]} : vector<1x512xf32> to vector<1x128xf32>
    %232 = arith.negf %231 : vector<1x128xf32>
    %233 = math.exp %232 : vector<1x128xf32>
    %cst_52 = arith.constant 1.000000e+00 : f32
    %234 = vector.broadcast %cst_52 : f32 to vector<1x128xf32>
    %235 = arith.addf %234, %233 : vector<1x128xf32>
    %236 = arith.divf %234, %235 : vector<1x128xf32>
    %237 = vector.extract_strided_slice %230 {offsets = [0, 128], sizes = [1, 128], strides = [1, 1]} : vector<1x512xf32> to vector<1x128xf32>
    %238 = arith.negf %237 : vector<1x128xf32>
    %239 = math.exp %238 : vector<1x128xf32>
    %cst_53 = arith.constant 1.000000e+00 : f32
    %240 = vector.broadcast %cst_53 : f32 to vector<1x128xf32>
    %241 = arith.addf %240, %239 : vector<1x128xf32>
    %242 = arith.divf %240, %241 : vector<1x128xf32>
    %243 = vector.extract_strided_slice %230 {offsets = [0, 256], sizes = [1, 128], strides = [1, 1]} : vector<1x512xf32> to vector<1x128xf32>
    %244 = math.tanh %243 : vector<1x128xf32>
    %245 = vector.extract_strided_slice %230 {offsets = [0, 384], sizes = [1, 128], strides = [1, 1]} : vector<1x512xf32> to vector<1x128xf32>
    %246 = arith.negf %245 : vector<1x128xf32>
    %247 = math.exp %246 : vector<1x128xf32>
    %cst_54 = arith.constant 1.000000e+00 : f32
    %248 = vector.broadcast %cst_54 : f32 to vector<1x128xf32>
    %249 = arith.addf %248, %247 : vector<1x128xf32>
    %250 = arith.divf %248, %249 : vector<1x128xf32>
    %251 = arith.mulf %242, %223 : vector<1x128xf32>
    %252 = arith.mulf %236, %244 : vector<1x128xf32>
    %253 = arith.addf %251, %252 : vector<1x128xf32>
    %254 = math.tanh %253 : vector<1x128xf32>
    %255 = arith.mulf %250, %254 : vector<1x128xf32>
    %c7 = arith.constant 7 : index
    %c0_55 = arith.constant 0 : index
    %256 = vector.load %arg6[%c7, %c0_55] : memref<8x128xf32, #tpu.memory_space<vmem>>, vector<1x128xf32>
    tpu.vector_store %arg6[%c7, %c0_55], %255 {strides = array<i32>} : memref<8x128xf32, #tpu.memory_space<vmem>>, vector<1x128xf32>,
    %c0_56 = arith.constant 0 : index
    %c0_57 = arith.constant 0 : index
    %257 = vector.load %arg7[%c0_56, %c0_57] : memref<1x128xf32, #tpu.memory_space<vmem>>, vector<1x128xf32>
    tpu.vector_store %arg7[%c0_56, %c0_57], %253 {strides = array<i32>} : memref<1x128xf32, #tpu.memory_space<vmem>>, vector<1x128xf32>,
    return
  }
}

</mosaic_0001>

<llo_original>
// kernel: rnn_forward.1
$region0: #{rnn_forward.1}
  #allocation0 [shape = 'u32[]', space=smem, size = 0x4, offset = 0x4, fixed_abs, tag = 'smem constant byte address 0x4 - core index']
  #allocation1 [shape = 'u32[144,128]{1,0:T(1,128)}', space=vmem, size = 0x12000, scoped, tag = 'internal scratch']
  %s0 = inlined_call_operand.vmem [shape: bf16[8,256], index: 0, kind: input, shape index: {}]
  %s1 = inlined_call_operand.hbm [shape: bf16[256,128], index: 1, kind: input, shape index: {}]
  %s2 = inlined_call_operand.vmem [shape: f32[1,128], index: 2, kind: input, shape index: {}]
  %s3 = inlined_call_operand.hbm [shape: bf16[128,512], index: 3, kind: input, shape index: {}]
  %s4 = inlined_call_operand.hbm [shape: bf16[128,512], index: 4, kind: input, shape index: {}]
  %s5 = inlined_call_operand.vmem [shape: f32[1,512], index: 5, kind: input, shape index: {}]
  %s6 = inlined_call_operand.vmem [shape: f32[8,128], index: 6, kind: output, shape index: {0}]
  %s7 = inlined_call_operand.vmem [shape: f32[1,128], index: 7, kind: output, shape index: {1}]
  %8 = xla_tuple %s6, %s7
  %s9 = sld [smem:[#allocation0]]
  $region54: #{rnn_forward.1} parent=0
    _
  %s11 = ssub.s32 1, %s9
  %s12 = scalar_select 0, %s11, %s9
  $region1: #{rnn_forward.1} parent=0
    #allocation2 [shape = 'u8[65536]{0}', space=vmem, size = 0x10000, scoped, tag = 'input window, operand 1, single buffered']
    #allocation3 [shape = 's32[1]{0}', space=sflag, size = 0x4, scoped, tag = 'scoped memory for rnn_forward.1']
    #allocation4 [shape = 'u8[131072]{0}', space=vmem, size = 0x20000, scoped, tag = 'input window, operand 3, single buffered']
    #allocation5 [shape = 's32[1]{0}', space=sflag, size = 0x4, scoped, tag = 'scoped memory for rnn_forward.1']
    #allocation6 [shape = 'u8[131072]{0}', space=vmem, size = 0x20000, scoped, tag = 'input window, operand 4, single buffered']
    %13 = vsyncpa [#allocation3], 0
    %14 = vsyncpa [#allocation5], 0
    // Predicated region
    $region2: #{rnn_forward.1} parent=1 // pred_check
      _
    $region3: #{rnn_forward.1} parent=1 // pred_check_branch
      %16 = sbr.rel (0) target = $region5
    $region4: #{rnn_forward.1} parent=1 // pred_region
      _
    $region5: #{rnn_forward.1} parent=1 // pred_fallthru
      _
    // Predicated region
    $region6: #{rnn_forward.1} parent=1 // pred_check
      _
    $region7: #{rnn_forward.1} parent=1 // pred_check_branch
      %18 = sbr.rel (0) target = $region9
    $region8: #{rnn_forward.1} parent=1 // pred_region
      %s20 = ssub.s32 2048, 2048
      %21 = vsyncadd [#allocation3], %s20
      %s22 = sshll.u32 [#allocation2], 4
      %s23 = int_to_ptr.vmem [resolvable:$true] %s22
      %28 = dma.hbm_to_vmem [thread:$0]  %s1, 2048, %s23, [#allocation3], 64, 64, 4
    $region9: #{rnn_forward.1} parent=1 // pred_fallthru
      _
    // Predicated region
    $region10: #{rnn_forward.1} parent=1 // pred_check
      _
    $region11: #{rnn_forward.1} parent=1 // pred_check_branch
      %30 = sbr.rel (0) target = $region13
    $region12: #{rnn_forward.1} parent=1 // pred_region
      _
    $region13: #{rnn_forward.1} parent=1 // pred_fallthru
      _
    // Predicated region
    $region14: #{rnn_forward.1} parent=1 // pred_check
      _
    $region15: #{rnn_forward.1} parent=1 // pred_check_branch
      %32 = sbr.rel (0) target = $region17
    $region16: #{rnn_forward.1} parent=1 // pred_region
      %s34 = ssub.s32 4096, 4096
      %35 = vsyncadd [#allocation5], %s34
      %s36 = sshll.u32 [#allocation4], 4
      %s37 = int_to_ptr.vmem [resolvable:$true] %s36
      %42 = dma.hbm_to_vmem [thread:$0]  %s3, 4096, %s37, [#allocation5], 256, 256, 16
    $region17: #{rnn_forward.1} parent=1 // pred_fallthru
      _
    // Predicated region
    $region18: #{rnn_forward.1} parent=1 // pred_check
      _
    $region19: #{rnn_forward.1} parent=1 // pred_check_branch
      %44 = sbr.rel (0) target = $region21
    $region20: #{rnn_forward.1} parent=1 // pred_region
      %s46 = ssub.s32 4096, 4096
      %47 = vsyncadd [#allocation5], %s46
      %s48 = sshll.u32 [#allocation6], 4
      %s49 = int_to_ptr.vmem [resolvable:$true] %s48
      %54 = dma.hbm_to_vmem [thread:$0]  %s4, 4096, %s49, [#allocation5], 256, 256, 16
    $region21: #{rnn_forward.1} parent=1 // pred_fallthru
      _
    // Predicated region
    $region22: #{rnn_forward.1} parent=1 // pred_check
      _
    $region23: #{rnn_forward.1} parent=1 // pred_check_branch
      %56 = sbr.rel (0) target = $region25
    $region24: #{rnn_forward.1} parent=1 // pred_region
      _
    $region25: #{rnn_forward.1} parent=1 // pred_fallthru
      _
    // Predicated region
    $region26: #{rnn_forward.1} parent=1 // pred_check
      _
    $region27: #{rnn_forward.1} parent=1 // pred_check_branch
      %58 = sbr.rel (0) target = $region29
    $region28: #{rnn_forward.1} parent=1 // pred_region
      %59 = dma.done [#allocation3], 2048
    $region29: #{rnn_forward.1} parent=1 // pred_fallthru
      _
    // Predicated region
    $region30: #{rnn_forward.1} parent=1 // pred_check
      _
    $region31: #{rnn_forward.1} parent=1 // pred_check_branch
      %61 = sbr.rel (0) target = $region33
    $region32: #{rnn_forward.1} parent=1 // pred_region
      %62 = dma.done [#allocation5], 4096
    $region33: #{rnn_forward.1} parent=1 // pred_fallthru
      _
    // Predicated region
    $region34: #{rnn_forward.1} parent=1 // pred_check
      _
    $region35: #{rnn_forward.1} parent=1 // pred_check_branch
      %64 = sbr.rel (0) target = $region37
    $region36: #{rnn_forward.1} parent=1 // pred_region
      %65 = dma.done [#allocation5], 4096
    $region37: #{rnn_forward.1} parent=1 // pred_fallthru
      _
    %v67 = vld [vmem:[%s0] sm:$0xff]
    %v68 = vld [vmem:[#allocation2] sm:$0xf]
    %v69 = vld [vmem:[#allocation2 + $0x4] sm:$0xf]
    %v70 = vld [vmem:[#allocation2 + $0x8] sm:$0xf]
    %v71 = vld [vmem:[#allocation2 + $0xc] sm:$0xf]
    %v72 = vld [vmem:[#allocation2 + $0x10] sm:$0xf]
    %v73 = vld [vmem:[#allocation2 + $0x14] sm:$0xf]
    %v74 = vld [vmem:[#allocation2 + $0x18] sm:$0xf]
    %v75 = vld [vmem:[#allocation2 + $0x1c] sm:$0xf]
    %v76 = vld [vmem:[#allocation2 + $0x20] sm:$0xf]
    %v77 = vld [vmem:[#allocation2 + $0x24] sm:$0xf]
    %v78 = vld [vmem:[#allocation2 + $0x28] sm:$0xf]
    %v79 = vld [vmem:[#allocation2 + $0x2c] sm:$0xf]
    %v80 = vld [vmem:[#allocation2 + $0x30] sm:$0xf]
    %v81 = vld [vmem:[#allocation2 + $0x34] sm:$0xf]
    %v82 = vld [vmem:[#allocation2 + $0x38] sm:$0xf]
    %v83 = vld [vmem:[#allocation2 + $0x3c] sm:$0xf]
    %v84 = vld [vmem:[#allocation2 + $0x40] sm:$0xf]
    %v85 = vld [vmem:[#allocation2 + $0x44] sm:$0xf]
    %v86 = vld [vmem:[#allocation2 + $0x48] sm:$0xf]
    %v87 = vld [vmem:[#allocation2 + $0x4c] sm:$0xf]
    %v88 = vld [vmem:[#allocation2 + $0x50] sm:$0xf]
    %v89 = vld [vmem:[#allocation2 + $0x54] sm:$0xf]
    %v90 = vld [vmem:[#allocation2 + $0x58] sm:$0xf]
    %v91 = vld [vmem:[#allocation2 + $0x5c] sm:$0xf]
    %v92 = vld [vmem:[#allocation2 + $0x60] sm:$0xf]
    %v93 = vld [vmem:[#allocation2 + $0x64] sm:$0xf]
    %v94 = vld [vmem:[#allocation2 + $0x68] sm:$0xf]
    %v95 = vld [vmem:[#allocation2 + $0x6c] sm:$0xf]
    %v96 = vld [vmem:[#allocation2 + $0x70] sm:$0xf]
    %v97 = vld [vmem:[#allocation2 + $0x74] sm:$0xf]
    %v98 = vld [vmem:[#allocation2 + $0x78] sm:$0xf]
    %v99 = vld [vmem:[#allocation2 + $0x7c] sm:$0xf]
    %v100 = vld [vmem:[%s2] sm:$0x1]
    %v102 = vlaneseq
    %v103 = vshrl.u32 %v102, 7
    %v104 = vsub.s32 0, %v103
    %v105 = vrot.slane %v100, %v104
    %v108 = vunpack.c.l.b16 %v67
    %v109 = vunpack.c.h.b16 %v67
    %v110 = vpack.c.b16 %v108, %v108
    %v111 = vpack.c.b16 %v109, %v109
    %v146 = vunpack.c.l.b16 %v68
    %v147 = vunpack.c.l.b16 %v69
    %v148 = vunpack.c.l.b16 %v70
    %v149 = vunpack.c.l.b16 %v71
    %v150 = vunpack.c.l.b16 %v72
    %v151 = vunpack.c.l.b16 %v73
    %v152 = vunpack.c.l.b16 %v74
    %v153 = vunpack.c.l.b16 %v75
    %v154 = vunpack.c.l.b16 %v76
    %v155 = vunpack.c.l.b16 %v77
    %v156 = vunpack.c.l.b16 %v78
    %v157 = vunpack.c.l.b16 %v79
    %v158 = vunpack.c.l.b16 %v80
    %v159 = vunpack.c.l.b16 %v81
    %v160 = vunpack.c.l.b16 %v82
    %v161 = vunpack.c.l.b16 %v83
    %v162 = vunpack.c.l.b16 %v84
    %v163 = vunpack.c.l.b16 %v85
    %v164 = vunpack.c.l.b16 %v86
    %v165 = vunpack.c.l.b16 %v87
    %v166 = vunpack.c.l.b16 %v88
    %v167 = vunpack.c.l.b16 %v89
    %v168 = vunpack.c.l.b16 %v90
    %v169 = vunpack.c.l.b16 %v91
    %v170 = vunpack.c.l.b16 %v92
    %v171 = vunpack.c.l.b16 %v93
    %v172 = vunpack.c.l.b16 %v94
    %v173 = vunpack.c.l.b16 %v95
    %v174 = vunpack.c.l.b16 %v96
    %v175 = vunpack.c.l.b16 %v97
    %v176 = vunpack.c.l.b16 %v98
    %v177 = vunpack.c.l.b16 %v99
    %v178 = vpack.c.b16 %v147, %v146
    %v179 = vpack.c.b16 %v149, %v148
    %v180 = vpack.c.b16 %v151, %v150
    %v181 = vpack.c.b16 %v153, %v152
    %v182 = vpack.c.b16 %v155, %v154
    %v183 = vpack.c.b16 %v157, %v156
    %v184 = vpack.c.b16 %v159, %v158
    %v185 = vpack.c.b16 %v161, %v160
    %v186 = vpack.c.b16 %v163, %v162
    %v187 = vpack.c.b16 %v165, %v164
    %v188 = vpack.c.b16 %v167, %v166
    %v189 = vpack.c.b16 %v169, %v168
    %v190 = vpack.c.b16 %v171, %v170
    %v191 = vpack.c.b16 %v173, %v172
    %v192 = vpack.c.b16 %v175, %v174
    %v193 = vpack.c.b16 %v177, %v176
    %210 = vmatprep.subr.bf16.mxu0 0
    %211 = vmatpush1.bf16.msra.mxu0 %v178
    %212 = vmatprep.subr.bf16.mxu0 0
    %213 = vmatpush1.bf16.msra.mxu0 %v179
    %214 = vmatprep.subr.bf16.mxu0 0
    %215 = vmatpush1.bf16.msra.mxu0 %v180
    %216 = vmatprep.subr.bf16.mxu0 0
    %217 = vmatpush1.bf16.msra.mxu0 %v181
    %218 = vmatprep.subr.bf16.mxu0 0
    %219 = vmatpush1.bf16.msra.mxu0 %v182
    %220 = vmatprep.subr.bf16.mxu0 0
    %221 = vmatpush1.bf16.msra.mxu0 %v183
    %222 = vmatprep.subr.bf16.mxu0 0
    %223 = vmatpush1.bf16.msra.mxu0 %v184
    %224 = vmatprep.subr.bf16.mxu0 0
    %225 = vmatpush1.bf16.msra.mxu0 %v185
    %226 = vmatprep.subr.bf16.mxu0 0
    %227 = vmatpush1.bf16.msra.mxu0 %v186
    %228 = vmatprep.subr.bf16.mxu0 0
    %229 = vmatpush1.bf16.msra.mxu0 %v187
    %230 = vmatprep.subr.bf16.mxu0 0
    %231 = vmatpush1.bf16.msra.mxu0 %v188
    %232 = vmatprep.subr.bf16.mxu0 0
    %233 = vmatpush1.bf16.msra.mxu0 %v189
    %234 = vmatprep.subr.bf16.mxu0 0
    %235 = vmatpush1.bf16.msra.mxu0 %v190
    %236 = vmatprep.subr.bf16.mxu0 0
    %237 = vmatpush1.bf16.msra.mxu0 %v191
    %238 = vmatprep.subr.bf16.mxu0 0
    %239 = vmatpush1.bf16.msra.mxu0 %v192
    %240 = vmatprep.subr.bf16.mxu0 0
    %241 = vmatpush1.bf16.msra.mxu0 %v193
    %242 = vmatprep.mubr.bf16.mxu0 %v111
    %243 = vmatmul.mubr.bf16.gmra.mrb[0].mxu0 %v110
    %v244 = vpop.f32.mrb[0].mxu0
    %v245 = vadd.f32 %v105, %v244
    %v246 = vpop.f32.mrb[0].mxu0
    %v247 = vpop.f32.mrb[0].mxu0
    %v248 = vpop.f32.mrb[0].mxu0
    %249 = vdwg.mxu0
    %v250 = vmax.f32 %v245, 0.0
    %v251 = vpack.c.bf16 %v250, %v250
    %v252 = vld [vmem:[#allocation4] sm:$0xff]
    %v253 = vld [vmem:[#allocation4 + $0x8] sm:$0xff]
    %v254 = vld [vmem:[#allocation4 + $0x10] sm:$0xff]
    %v255 = vld [vmem:[#allocation4 + $0x18] sm:$0xff]
    %v256 = vld [vmem:[#allocation4 + $0x20] sm:$0xff]
    %v257 = vld [vmem:[#allocation4 + $0x28] sm:$0xff]
    %v258 = vld [vmem:[#allocation4 + $0x30] sm:$0xff]
    %v259 = vld [vmem:[#allocation4 + $0x38] sm:$0xff]
    %v260 = vld [vmem:[#allocation4 + $0x40] sm:$0xff]
    %v261 = vld [vmem:[#allocation4 + $0x48] sm:$0xff]
    %v262 = vld [vmem:[#allocation4 + $0x50] sm:$0xff]
    %v263 = vld [vmem:[#allocation4 + $0x58] sm:$0xff]
    %v264 = vld [vmem:[#allocation4 + $0x60] sm:$0xff]
    %v265 = vld [vmem:[#allocation4 + $0x68] sm:$0xff]
    %v266 = vld [vmem:[#allocation4 + $0x70] sm:$0xff]
    %v267 = vld [vmem:[#allocation4 + $0x78] sm:$0xff]
    %v268 = vld [vmem:[#allocation4 + $0x80] sm:$0xff]
    %v269 = vld [vmem:[#allocation4 + $0x88] sm:$0xff]
    %v270 = vld [vmem:[#allocation4 + $0x90] sm:$0xff]
    %v271 = vld [vmem:[#allocation4 + $0x98] sm:$0xff]
    %v272 = vld [vmem:[#allocation4 + $0xa0] sm:$0xff]
    %v273 = vld [vmem:[#allocation4 + $0xa8] sm:$0xff]
    %v274 = vld [vmem:[#allocation4 + $0xb0] sm:$0xff]
    %v275 = vld [vmem:[#allocation4 + $0xb8] sm:$0xff]
    %v276 = vld [vmem:[#allocation4 + $0xc0] sm:$0xff]
    %v277 = vld [vmem:[#allocation4 + $0xc8] sm:$0xff]
    %v278 = vld [vmem:[#allocation4 + $0xd0] sm:$0xff]
    %v279 = vld [vmem:[#allocation4 + $0xd8] sm:$0xff]
    %v280 = vld [vmem:[#allocation4 + $0xe0] sm:$0xff]
    %v281 = vld [vmem:[#allocation4 + $0xe8] sm:$0xff]
    %v282 = vld [vmem:[#allocation4 + $0xf0] sm:$0xff]
    %v283 = vld [vmem:[#allocation4 + $0xf8] sm:$0xff]
    %v284 = vld [vmem:[%s5] sm:$0xf]
    %v286 = vlaneseq
    %v287 = vshrl.u32 %v286, 7
    %v288 = vsub.s32 0, %v287
    %v289 = vrot.slane %v284, %v288
    %v290 = vlaneseq
    %v291 = vshrl.u32 %v290, 7
    %v292 = vsub.s32 1, %v291
    %v293 = vrot.slane %v284, %v292
    %v294 = vlaneseq
    %v295 = vshrl.u32 %v294, 7
    %v296 = vsub.s32 2, %v295
    %v297 = vrot.slane %v284, %v296
    %v298 = vlaneseq
    %v299 = vshrl.u32 %v298, 7
    %v300 = vsub.s32 3, %v299
    %v301 = vrot.slane %v284, %v300
    %v338 = vunpack.c.l.b16 %v252
    %v339 = vunpack.c.h.b16 %v252
    %v340 = vunpack.c.l.b16 %v253
    %v341 = vunpack.c.h.b16 %v253
    %v342 = vunpack.c.l.b16 %v254
    %v343 = vunpack.c.h.b16 %v254
    %v344 = vunpack.c.l.b16 %v255
    %v345 = vunpack.c.h.b16 %v255
    %v346 = vunpack.c.l.b16 %v256
    %v347 = vunpack.c.h.b16 %v256
    %v348 = vunpack.c.l.b16 %v257
    %v349 = vunpack.c.h.b16 %v257
    %v350 = vunpack.c.l.b16 %v258
    %v351 = vunpack.c.h.b16 %v258
    %v352 = vunpack.c.l.b16 %v259
    %v353 = vunpack.c.h.b16 %v259
    %v354 = vunpack.c.l.b16 %v260
    %v355 = vunpack.c.h.b16 %v260
    %v356 = vunpack.c.l.b16 %v261
    %v357 = vunpack.c.h.b16 %v261
    %v358 = vunpack.c.l.b16 %v262
    %v359 = vunpack.c.h.b16 %v262
    %v360 = vunpack.c.l.b16 %v263
    %v361 = vunpack.c.h.b16 %v263
    %v362 = vunpack.c.l.b16 %v264
    %v363 = vunpack.c.h.b16 %v264
    %v364 = vunpack.c.l.b16 %v265
    %v365 = vunpack.c.h.b16 %v265
    %v366 = vunpack.c.l.b16 %v266
    %v367 = vunpack.c.h.b16 %v266
    %v368 = vunpack.c.l.b16 %v267
    %v369 = vunpack.c.h.b16 %v267
    %v370 = vunpack.c.l.b16 %v268
    %v371 = vunpack.c.h.b16 %v268
    %v372 = vunpack.c.l.b16 %v269
    %v373 = vunpack.c.h.b16 %v269
    %v374 = vunpack.c.l.b16 %v270
    %v375 = vunpack.c.h.b16 %v270
    %v376 = vunpack.c.l.b16 %v271
    %v377 = vunpack.c.h.b16 %v271
    %v378 = vunpack.c.l.b16 %v272
    %v379 = vunpack.c.h.b16 %v272
    %v380 = vunpack.c.l.b16 %v273
    %v381 = vunpack.c.h.b16 %v273
    %v382 = vunpack.c.l.b16 %v274
    %v383 = vunpack.c.h.b16 %v274
    %v384 = vunpack.c.l.b16 %v275
    %v385 = vunpack.c.h.b16 %v275
    %v386 = vunpack.c.l.b16 %v276
    %v387 = vunpack.c.h.b16 %v276
    %v388 = vunpack.c.l.b16 %v277
    %v389 = vunpack.c.h.b16 %v277
    %v390 = vunpack.c.l.b16 %v278
    %v391 = vunpack.c.h.b16 %v278
    %v392 = vunpack.c.l.b16 %v279
    %v393 = vunpack.c.h.b16 %v279
    %v394 = vunpack.c.l.b16 %v280
    %v395 = vunpack.c.h.b16 %v280
    %v396 = vunpack.c.l.b16 %v281
    %v397 = vunpack.c.h.b16 %v281
    %v398 = vunpack.c.l.b16 %v282
    %v399 = vunpack.c.h.b16 %v282
    %v400 = vunpack.c.l.b16 %v283
    %v401 = vunpack.c.h.b16 %v283
    %v402 = vpack.c.b16 %v342, %v338
    %v403 = vpack.c.b16 %v343, %v339
    %v404 = vpack.c.b16 %v344, %v340
    %v405 = vpack.c.b16 %v345, %v341
    %v406 = vpack.c.b16 %v350, %v346
    %v407 = vpack.c.b16 %v351, %v347
    %v408 = vpack.c.b16 %v352, %v348
    %v409 = vpack.c.b16 %v353, %v349
    %v410 = vpack.c.b16 %v358, %v354
    %v411 = vpack.c.b16 %v359, %v355
    %v412 = vpack.c.b16 %v360, %v356
    %v413 = vpack.c.b16 %v361, %v357
    %v414 = vpack.c.b16 %v366, %v362
    %v415 = vpack.c.b16 %v367, %v363
    %v416 = vpack.c.b16 %v368, %v364
    %v417 = vpack.c.b16 %v369, %v365
    %v418 = vpack.c.b16 %v374, %v370
    %v419 = vpack.c.b16 %v375, %v371
    %v420 = vpack.c.b16 %v376, %v372
    %v421 = vpack.c.b16 %v377, %v373
    %v422 = vpack.c.b16 %v382, %v378
    %v423 = vpack.c.b16 %v383, %v379
    %v424 = vpack.c.b16 %v384, %v380
    %v425 = vpack.c.b16 %v385, %v381
    %v426 = vpack.c.b16 %v390, %v386
    %v427 = vpack.c.b16 %v391, %v387
    %v428 = vpack.c.b16 %v392, %v388
    %v429 = vpack.c.b16 %v393, %v389
    %v430 = vpack.c.b16 %v398, %v394
    %v431 = vpack.c.b16 %v399, %v395
    %v432 = vpack.c.b16 %v400, %v396
    %v433 = vpack.c.b16 %v401, %v397
    %466 = vmatprep.subr.bf16.mxu0 %v403
    %467 = vmatpush1.bf16.msra.mxu0 %v402
    %468 = vmatprep.subr.bf16.mxu0 %v407
    %469 = vmatpush1.bf16.msra.mxu0 %v406
    %470 = vmatprep.subr.bf16.mxu0 %v411
    %471 = vmatpush1.bf16.msra.mxu0 %v410
    %472 = vmatprep.subr.bf16.mxu0 %v415
    %473 = vmatpush1.bf16.msra.mxu0 %v414
    %474 = vmatprep.subr.bf16.mxu0 %v419
    %475 = vmatpush1.bf16.msra.mxu0 %v418
    %476 = vmatprep.subr.bf16.mxu0 %v423
    %477 = vmatpush1.bf16.msra.mxu0 %v422
    %478 = vmatprep.subr.bf16.mxu0 %v427
    %479 = vmatpush1.bf16.msra.mxu0 %v426
    %480 = vmatprep.subr.bf16.mxu0 %v431
    %481 = vmatpush1.bf16.msra.mxu0 %v430
    %482 = vmatprep.subr.bf16.mxu0 0
    %483 = vmatpush1.bf16.msra.mxu0 0
    %484 = vmatprep.subr.bf16.mxu0 0
    %485 = vmatpush1.bf16.msra.mxu0 0
    %486 = vmatprep.subr.bf16.mxu0 0
    %487 = vmatpush1.bf16.msra.mxu0 0
    %488 = vmatprep.subr.bf16.mxu0 0
    %489 = vmatpush1.bf16.msra.mxu0 0
    %490 = vmatprep.subr.bf16.mxu0 0
    %491 = vmatpush1.bf16.msra.mxu0 0
    %492 = vmatprep.subr.bf16.mxu0 0
    %493 = vmatpush1.bf16.msra.mxu0 0
    %494 = vmatprep.subr.bf16.mxu0 0
    %495 = vmatpush1.bf16.msra.mxu0 0
    %496 = vmatprep.subr.bf16.mxu0 0
    %497 = vmatpush1.bf16.msra.mxu0 0
    %498 = vmatprep.mubr.bf16.mxu0 0
    %499 = vmatmul.mubr.bf16.gmra.mrb[0].mxu0 %v251
    %v500 = vpop.f32.mrb[0].mxu0
    %v501 = vadd.f32 %v289, %v500
    %v502 = vpop.f32.mrb[0].mxu0
    %v503 = vadd.f32 %v293, %v502
    %v504 = vpop.f32.mrb[0].mxu0
    %v505 = vpop.f32.mrb[0].mxu0
    %506 = vdwg.mxu0
    %507 = vmatprep.subr.bf16.mxu0 %v405
    %508 = vmatpush1.bf16.msra.mxu0 %v404
    %509 = vmatprep.subr.bf16.mxu0 %v409
    %510 = vmatpush1.bf16.msra.mxu0 %v408
    %511 = vmatprep.subr.bf16.mxu0 %v413
    %512 = vmatpush1.bf16.msra.mxu0 %v412
    %513 = vmatprep.subr.bf16.mxu0 %v417
    %514 = vmatpush1.bf16.msra.mxu0 %v416
    %515 = vmatprep.subr.bf16.mxu0 %v421
    %516 = vmatpush1.bf16.msra.mxu0 %v420
    %517 = vmatprep.subr.bf16.mxu0 %v425
    %518 = vmatpush1.bf16.msra.mxu0 %v424
    %519 = vmatprep.subr.bf16.mxu0 %v429
    %520 = vmatpush1.bf16.msra.mxu0 %v428
    %521 = vmatprep.subr.bf16.mxu0 %v433
    %522 = vmatpush1.bf16.msra.mxu0 %v432
    %523 = vmatprep.subr.bf16.mxu0 0
    %524 = vmatpush1.bf16.msra.mxu0 0
    %525 = vmatprep.subr.bf16.mxu0 0
    %526 = vmatpush1.bf16.msra.mxu0 0
    %527 = vmatprep.subr.bf16.mxu0 0
    %528 = vmatpush1.bf16.msra.mxu0 0
    %529 = vmatprep.subr.bf16.mxu0 0
    %530 = vmatpush1.bf16.msra.mxu0 0
    %531 = vmatprep.subr.bf16.mxu0 0
    %532 = vmatpush1.bf16.msra.mxu0 0
    %533 = vmatprep.subr.bf16.mxu0 0
    %534 = vmatpush1.bf16.msra.mxu0 0
    %535 = vmatprep.subr.bf16.mxu0 0
    %536 = vmatpush1.bf16.msra.mxu0 0
    %537 = vmatprep.subr.bf16.mxu0 0
    %538 = vmatpush1.bf16.msra.mxu0 0
    %539 = vmatprep.mubr.bf16.mxu0 0
    %540 = vmatmul.mubr.bf16.gmra.mrb[0].mxu0 %v251
    %v541 = vpop.f32.mrb[0].mxu0
    %v542 = vadd.f32 %v297, %v541
    %v543 = vpop.f32.mrb[0].mxu0
    %v544 = vadd.f32 %v301, %v543
    %v545 = vpop.f32.mrb[0].mxu0
    %v546 = vpop.f32.mrb[0].mxu0
    %547 = vdwg.mxu0
    %v548 = vld [vmem:[#allocation6] sm:$0xff]
    %v549 = vld [vmem:[#allocation6 + $0x8] sm:$0xff]
    %v550 = vld [vmem:[#allocation6 + $0x10] sm:$0xff]
    %v551 = vld [vmem:[#allocation6 + $0x18] sm:$0xff]
    %v552 = vld [vmem:[#allocation6 + $0x20] sm:$0xff]
    %v553 = vld [vmem:[#allocation6 + $0x28] sm:$0xff]
    %v554 = vld [vmem:[#allocation6 + $0x30] sm:$0xff]
    %v555 = vld [vmem:[#allocation6 + $0x38] sm:$0xff]
    %v556 = vld [vmem:[#allocation6 + $0x40] sm:$0xff]
    %v557 = vld [vmem:[#allocation6 + $0x48] sm:$0xff]
    %v558 = vld [vmem:[#allocation6 + $0x50] sm:$0xff]
    %v559 = vld [vmem:[#allocation6 + $0x58] sm:$0xff]
    %v560 = vld [vmem:[#allocation6 + $0x60] sm:$0xff]
    %v561 = vld [vmem:[#allocation6 + $0x68] sm:$0xff]
    %v562 = vld [vmem:[#allocation6 + $0x70] sm:$0xff]
    %v563 = vld [vmem:[#allocation6 + $0x78] sm:$0xff]
    %v564 = vld [vmem:[#allocation6 + $0x80] sm:$0xff]
    %v565 = vld [vmem:[#allocation6 + $0x88] sm:$0xff]
    %v566 = vld [vmem:[#allocation6 + $0x90] sm:$0xff]
    %v567 = vld [vmem:[#allocation6 + $0x98] sm:$0xff]
    %v568 = vld [vmem:[#allocation6 + $0xa0] sm:$0xff]
    %v569 = vld [vmem:[#allocation6 + $0xa8] sm:$0xff]
    %v570 = vld [vmem:[#allocation6 + $0xb0] sm:$0xff]
    %v571 = vld [vmem:[#allocation6 + $0xb8] sm:$0xff]
    %v572 = vld [vmem:[#allocation6 + $0xc0] sm:$0xff]
    %v573 = vld [vmem:[#allocation6 + $0xc8] sm:$0xff]
    %v574 = vld [vmem:[#allocation6 + $0xd0] sm:$0xff]
    %v575 = vld [vmem:[#allocation6 + $0xd8] sm:$0xff]
    %v576 = vld [vmem:[#allocation6 + $0xe0] sm:$0xff]
    %v577 = vld [vmem:[#allocation6 + $0xe8] sm:$0xff]
    %v578 = vld [vmem:[#allocation6 + $0xf0] sm:$0xff]
    %v579 = vld [vmem:[#allocation6 + $0xf8] sm:$0xff]
    %v612 = vunpack.c.l.b16 %v548
    %v613 = vunpack.c.h.b16 %v548
    %v614 = vunpack.c.l.b16 %v549
    %v615 = vunpack.c.h.b16 %v549
    %v616 = vunpack.c.l.b16 %v550
    %v617 = vunpack.c.h.b16 %v550
    %v618 = vunpack.c.l.b16 %v551
    %v619 = vunpack.c.h.b16 %v551
    %v620 = vunpack.c.l.b16 %v552
    %v621 = vunpack.c.h.b16 %v552
    %v622 = vunpack.c.l.b16 %v553
    %v623 = vunpack.c.h.b16 %v553
    %v624 = vunpack.c.l.b16 %v554
    %v625 = vunpack.c.h.b16 %v554
    %v626 = vunpack.c.l.b16 %v555
    %v627 = vunpack.c.h.b16 %v555
    %v628 = vunpack.c.l.b16 %v556
    %v629 = vunpack.c.h.b16 %v556
    %v630 = vunpack.c.l.b16 %v557
    %v631 = vunpack.c.h.b16 %v557
    %v632 = vunpack.c.l.b16 %v558
    %v633 = vunpack.c.h.b16 %v558
    %v634 = vunpack.c.l.b16 %v559
    %v635 = vunpack.c.h.b16 %v559
    %v636 = vunpack.c.l.b16 %v560
    %v637 = vunpack.c.h.b16 %v560
    %v638 = vunpack.c.l.b16 %v561
    %v639 = vunpack.c.h.b16 %v561
    %v640 = vunpack.c.l.b16 %v562
    %v641 = vunpack.c.h.b16 %v562
    %v642 = vunpack.c.l.b16 %v563
    %v643 = vunpack.c.h.b16 %v563
    %v644 = vunpack.c.l.b16 %v564
    %v645 = vunpack.c.h.b16 %v564
    %v646 = vunpack.c.l.b16 %v565
    %v647 = vunpack.c.h.b16 %v565
    %v648 = vunpack.c.l.b16 %v566
    %v649 = vunpack.c.h.b16 %v566
    %v650 = vunpack.c.l.b16 %v567
    %v651 = vunpack.c.h.b16 %v567
    %v652 = vunpack.c.l.b16 %v568
    %v653 = vunpack.c.h.b16 %v568
    %v654 = vunpack.c.l.b16 %v569
    %v655 = vunpack.c.h.b16 %v569
    %v656 = vunpack.c.l.b16 %v570
    %v657 = vunpack.c.h.b16 %v570
    %v658 = vunpack.c.l.b16 %v571
    %v659 = vunpack.c.h.b16 %v571
    %v660 = vunpack.c.l.b16 %v572
    %v661 = vunpack.c.h.b16 %v572
    %v662 = vunpack.c.l.b16 %v573
    %v663 = vunpack.c.h.b16 %v573
    %v664 = vunpack.c.l.b16 %v574
    %v665 = vunpack.c.h.b16 %v574
    %v666 = vunpack.c.l.b16 %v575
    %v667 = vunpack.c.h.b16 %v575
    %v668 = vunpack.c.l.b16 %v576
    %v669 = vunpack.c.h.b16 %v576
    %v670 = vunpack.c.l.b16 %v577
    %v671 = vunpack.c.h.b16 %v577
    %v672 = vunpack.c.l.b16 %v578
    %v673 = vunpack.c.h.b16 %v578
    %v674 = vunpack.c.l.b16 %v579
    %v675 = vunpack.c.h.b16 %v579
    %v676 = vpack.c.b16 %v616, %v612
    %v677 = vpack.c.b16 %v617, %v613
    %v678 = vpack.c.b16 %v618, %v614
    %v679 = vpack.c.b16 %v619, %v615
    %v680 = vpack.c.b16 %v624, %v620
    %v681 = vpack.c.b16 %v625, %v621
    %v682 = vpack.c.b16 %v626, %v622
    %v683 = vpack.c.b16 %v627, %v623
    %v684 = vpack.c.b16 %v632, %v628
    %v685 = vpack.c.b16 %v633, %v629
    %v686 = vpack.c.b16 %v634, %v630
    %v687 = vpack.c.b16 %v635, %v631
    %v688 = vpack.c.b16 %v640, %v636
    %v689 = vpack.c.b16 %v641, %v637
    %v690 = vpack.c.b16 %v642, %v638
    %v691 = vpack.c.b16 %v643, %v639
    %v692 = vpack.c.b16 %v648, %v644
    %v693 = vpack.c.b16 %v649, %v645
    %v694 = vpack.c.b16 %v650, %v646
    %v695 = vpack.c.b16 %v651, %v647
    %v696 = vpack.c.b16 %v656, %v652
    %v697 = vpack.c.b16 %v657, %v653
    %v698 = vpack.c.b16 %v658, %v654
    %v699 = vpack.c.b16 %v659, %v655
    %v700 = vpack.c.b16 %v664, %v660
    %v701 = vpack.c.b16 %v665, %v661
    %v702 = vpack.c.b16 %v666, %v662
    %v703 = vpack.c.b16 %v667, %v663
    %v704 = vpack.c.b16 %v672, %v668
    %v705 = vpack.c.b16 %v673, %v669
    %v706 = vpack.c.b16 %v674, %v670
    %v707 = vpack.c.b16 %v675, %v671
    %740 = vmatprep.subr.bf16.mxu0 %v677
    %741 = vmatpush1.bf16.msra.mxu0 %v676
    %742 = vmatprep.subr.bf16.mxu0 %v681
    %743 = vmatpush1.bf16.msra.mxu0 %v680
    %744 = vmatprep.subr.bf16.mxu0 %v685
    %745 = vmatpush1.bf16.msra.mxu0 %v684
    %746 = vmatprep.subr.bf16.mxu0 %v689
    %747 = vmatpush1.bf16.msra.mxu0 %v688
    %748 = vmatprep.subr.bf16.mxu0 %v693
    %749 = vmatpush1.bf16.msra.mxu0 %v692
    %750 = vmatprep.subr.bf16.mxu0 %v697
    %751 = vmatpush1.bf16.msra.mxu0 %v696
    %752 = vmatprep.subr.bf16.mxu0 %v701
    %753 = vmatpush1.bf16.msra.mxu0 %v700
    %754 = vmatprep.subr.bf16.mxu0 %v705
    %755 = vmatpush1.bf16.msra.mxu0 %v704
    %756 = vmatprep.subr.bf16.mxu0 0
    %757 = vmatpush1.bf16.msra.mxu0 0
    %758 = vmatprep.subr.bf16.mxu0 0
    %759 = vmatpush1.bf16.msra.mxu0 0
    %760 = vmatprep.subr.bf16.mxu0 0
    %761 = vmatpush1.bf16.msra.mxu0 0
    %762 = vmatprep.subr.bf16.mxu0 0
    %763 = vmatpush1.bf16.msra.mxu0 0
    %764 = vmatprep.subr.bf16.mxu0 0
    %765 = vmatpush1.bf16.msra.mxu0 0
    %766 = vmatprep.subr.bf16.mxu0 0
    %767 = vmatpush1.bf16.msra.mxu0 0
    %768 = vmatprep.subr.bf16.mxu0 0
    %769 = vmatpush1.bf16.msra.mxu0 0
    %770 = vmatprep.subr.bf16.mxu0 0
    %771 = vmatpush1.bf16.msra.mxu0 0
    %772 = vmatprep.mubr.bf16.mxu0 0
    %773 = vmatmul.mubr.bf16.gmra.mrb[0].mxu0 0
    %v774 = vpop.f32.mrb[0].mxu0
    %v775 = vadd.f32 0.0, %v774
    %v776 = vpop.f32.mrb[0].mxu0
    %v777 = vadd.f32 0.0, %v776
    %v778 = vpop.f32.mrb[0].mxu0
    %v779 = vpop.f32.mrb[0].mxu0
    %780 = vdwg.mxu0
    %781 = vmatprep.subr.bf16.mxu0 %v679
    %782 = vmatpush1.bf16.msra.mxu0 %v678
    %783 = vmatprep.subr.bf16.mxu0 %v683
    %784 = vmatpush1.bf16.msra.mxu0 %v682
    %785 = vmatprep.subr.bf16.mxu0 %v687
    %786 = vmatpush1.bf16.msra.mxu0 %v686
    %787 = vmatprep.subr.bf16.mxu0 %v691
    %788 = vmatpush1.bf16.msra.mxu0 %v690
    %789 = vmatprep.subr.bf16.mxu0 %v695
    %790 = vmatpush1.bf16.msra.mxu0 %v694
    %791 = vmatprep.subr.bf16.mxu0 %v699
    %792 = vmatpush1.bf16.msra.mxu0 %v698
    %793 = vmatprep.subr.bf16.mxu0 %v703
    %794 = vmatpush1.bf16.msra.mxu0 %v702
    %795 = vmatprep.subr.bf16.mxu0 %v707
    %796 = vmatpush1.bf16.msra.mxu0 %v706
    %797 = vmatprep.subr.bf16.mxu0 0
    %798 = vmatpush1.bf16.msra.mxu0 0
    %799 = vmatprep.subr.bf16.mxu0 0
    %800 = vmatpush1.bf16.msra.mxu0 0
    %801 = vmatprep.subr.bf16.mxu0 0
    %802 = vmatpush1.bf16.msra.mxu0 0
    %803 = vmatprep.subr.bf16.mxu0 0
    %804 = vmatpush1.bf16.msra.mxu0 0
    %805 = vmatprep.subr.bf16.mxu0 0
    %806 = vmatpush1.bf16.msra.mxu0 0
    %807 = vmatprep.subr.bf16.mxu0 0
    %808 = vmatpush1.bf16.msra.mxu0 0
    %809 = vmatprep.subr.bf16.mxu0 0
    %810 = vmatpush1.bf16.msra.mxu0 0
    %811 = vmatprep.subr.bf16.mxu0 0
    %812 = vmatpush1.bf16.msra.mxu0 0
    %813 = vmatprep.mubr.bf16.mxu0 0
    %814 = vmatmul.mubr.bf16.gmra.mrb[0].mxu0 0
    %v815 = vpop.f32.mrb[0].mxu0
    %v816 = vadd.f32 0.0, %v815
    %v817 = vpop.f32.mrb[0].mxu0
    %v818 = vadd.f32 0.0, %v817
    %v819 = vpop.f32.mrb[0].mxu0
    %v820 = vpop.f32.mrb[0].mxu0
    %821 = vdwg.mxu0
    %v822 = vadd.f32 %v501, %v775
    %v823 = vadd.f32 %v503, %v777
    %v824 = vadd.f32 %v542, %v816
    %v825 = vadd.f32 %v544, %v818
    %v826 = vxor.u32 %v822, 2147483648
    %v827 = vmul.f32 %v826, 1.442695
    %v828 = vpow.pop %v827
    %v829 = vadd.f32 %v828, 1.0
    %v830 = vrcp.pop %v829
    %v831 = vmul.f32 1.0, %v830
    %v832 = vxor.u32 %v823, 2147483648
    %v833 = vmul.f32 %v832, 1.442695
    %v834 = vpow.pop %v833
    %v835 = vadd.f32 %v834, 1.0
    %v836 = vrcp.pop %v835
    %v837 = vmul.f32 1.0, %v836
    %v838 = vtanh.pop %v824
    %v839 = vxor.u32 %v825, 2147483648
    %v840 = vmul.f32 %v839, 1.442695
    %v841 = vpow.pop %v840
    %v842 = vadd.f32 %v841, 1.0
    %v843 = vrcp.pop %v842
    %v844 = vmul.f32 1.0, %v843
    %v845 = vmul.f32 %v837, 0.0
    %v846 = vmul.f32 %v831, %v838
    %v847 = vadd.f32 %v845, %v846
    %v848 = vtanh.pop %v847
    %v849 = vmul.f32 %v844, %v848
    %850 = vst [vmem:[%s6] sm:$0x1] %v849
    %v851 = vpack.c.bf16 %v849, %v849
    %852 = vmatprep.subr.bf16.mxu0 %v677
    %853 = vmatpush1.bf16.msra.mxu0 %v676
    %854 = vmatprep.subr.bf16.mxu0 %v681
    %855 = vmatpush1.bf16.msra.mxu0 %v680
    %856 = vmatprep.subr.bf16.mxu0 %v685
    %857 = vmatpush1.bf16.msra.mxu0 %v684
    %858 = vmatprep.subr.bf16.mxu0 %v689
    %859 = vmatpush1.bf16.msra.mxu0 %v688
    %860 = vmatprep.subr.bf16.mxu0 %v693
    %861 = vmatpush1.bf16.msra.mxu0 %v692
    %862 = vmatprep.subr.bf16.mxu0 %v697
    %863 = vmatpush1.bf16.msra.mxu0 %v696
    %864 = vmatprep.subr.bf16.mxu0 %v701
    %865 = vmatpush1.bf16.msra.mxu0 %v700
    %866 = vmatprep.subr.bf16.mxu0 %v705
    %867 = vmatpush1.bf16.msra.mxu0 %v704
    %868 = vmatprep.subr.bf16.mxu0 0
    %869 = vmatpush1.bf16.msra.mxu0 0
    %870 = vmatprep.subr.bf16.mxu0 0
    %871 = vmatpush1.bf16.msra.mxu0 0
    %872 = vmatprep.subr.bf16.mxu0 0
    %873 = vmatpush1.bf16.msra.mxu0 0
    %874 = vmatprep.subr.bf16.mxu0 0
    %875 = vmatpush1.bf16.msra.mxu0 0
    %876 = vmatprep.subr.bf16.mxu0 0
    %877 = vmatpush1.bf16.msra.mxu0 0
    %878 = vmatprep.subr.bf16.mxu0 0
    %879 = vmatpush1.bf16.msra.mxu0 0
    %880 = vmatprep.subr.bf16.mxu0 0
    %881 = vmatpush1.bf16.msra.mxu0 0
    %882 = vmatprep.subr.bf16.mxu0 0
    %883 = vmatpush1.bf16.msra.mxu0 0
    %884 = vmatprep.mubr.bf16.mxu0 0
    %885 = vmatmul.mubr.bf16.gmra.mrb[0].mxu0 %v851
    %v886 = vpop.f32.mrb[0].mxu0
    %v887 = vadd.f32 0.0, %v886
    %v888 = vpop.f32.mrb[0].mxu0
    %v889 = vadd.f32 0.0, %v888
    %v890 = vpop.f32.mrb[0].mxu0
    %v891 = vpop.f32.mrb[0].mxu0
    %892 = vdwg.mxu0
    %893 = vmatprep.subr.bf16.mxu0 %v679
    %894 = vmatpush1.bf16.msra.mxu0 %v678
    %895 = vmatprep.subr.bf16.mxu0 %v683
    %896 = vmatpush1.bf16.msra.mxu0 %v682
    %897 = vmatprep.subr.bf16.mxu0 %v687
    %898 = vmatpush1.bf16.msra.mxu0 %v686
    %899 = vmatprep.subr.bf16.mxu0 %v691
    %900 = vmatpush1.bf16.msra.mxu0 %v690
    %901 = vmatprep.subr.bf16.mxu0 %v695
    %902 = vmatpush1.bf16.msra.mxu0 %v694
    %903 = vmatprep.subr.bf16.mxu0 %v699
    %904 = vmatpush1.bf16.msra.mxu0 %v698
    %905 = vmatprep.subr.bf16.mxu0 %v703
    %906 = vmatpush1.bf16.msra.mxu0 %v702
    %907 = vmatprep.subr.bf16.mxu0 %v707
    %908 = vmatpush1.bf16.msra.mxu0 %v706
    %909 = vmatprep.subr.bf16.mxu0 0
    %910 = vmatpush1.bf16.msra.mxu0 0
    %911 = vmatprep.subr.bf16.mxu0 0
    %912 = vmatpush1.bf16.msra.mxu0 0
    %913 = vmatprep.subr.bf16.mxu0 0
    %914 = vmatpush1.bf16.msra.mxu0 0
    %915 = vmatprep.subr.bf16.mxu0 0
    %916 = vmatpush1.bf16.msra.mxu0 0
    %917 = vmatprep.subr.bf16.mxu0 0
    %918 = vmatpush1.bf16.msra.mxu0 0
    %919 = vmatprep.subr.bf16.mxu0 0
    %920 = vmatpush1.bf16.msra.mxu0 0
    %921 = vmatprep.subr.bf16.mxu0 0
    %922 = vmatpush1.bf16.msra.mxu0 0
    %923 = vmatprep.subr.bf16.mxu0 0
    %924 = vmatpush1.bf16.msra.mxu0 0
    %925 = vmatprep.mubr.bf16.mxu0 0
    %926 = vmatmul.mubr.bf16.gmra.mrb[0].mxu0 %v851
    %v927 = vpop.f32.mrb[0].mxu0
    %v928 = vadd.f32 0.0, %v927
    %v929 = vpop.f32.mrb[0].mxu0
    %v930 = vadd.f32 0.0, %v929
    %v931 = vpop.f32.mrb[0].mxu0
    %v932 = vpop.f32.mrb[0].mxu0
    %933 = vdwg.mxu0
    %v938 = vrot.slane %v887, 7
    %v939 = vrot.slane %v889, 7
    %v940 = vrot.slane %v928, 7
    %v941 = vrot.slane %v930, 7
    %v946 = vadd.f32 %v501, %v938
    %v947 = vadd.f32 %v503, %v939
    %v948 = vadd.f32 %v542, %v940
    %v949 = vadd.f32 %v544, %v941
    %v950 = vxor.u32 %v946, 2147483648
    %v951 = vmul.f32 %v950, 1.442695
    %v952 = vpow.pop %v951
    %v953 = vadd.f32 %v952, 1.0
    %v954 = vrcp.pop %v953
    %v955 = vmul.f32 1.0, %v954
    %v956 = vxor.u32 %v947, 2147483648
    %v957 = vmul.f32 %v956, 1.442695
    %v958 = vpow.pop %v957
    %v959 = vadd.f32 %v958, 1.0
    %v960 = vrcp.pop %v959
    %v961 = vmul.f32 1.0, %v960
    %v962 = vtanh.pop %v948
    %v963 = vxor.u32 %v949, 2147483648
    %v964 = vmul.f32 %v963, 1.442695
    %v965 = vpow.pop %v964
    %v966 = vadd.f32 %v965, 1.0
    %v967 = vrcp.pop %v966
    %v968 = vmul.f32 1.0, %v967
    %v970 = vrot.slane %v847, 7
    %v972 = vmul.f32 %v961, %v970
    %v973 = vmul.f32 %v955, %v962
    %v974 = vadd.f32 %v972, %v973
    %v975 = vtanh.pop %v974
    %v976 = vmul.f32 %v968, %v975
    %977 = vst [vmem:[%s6] sm:$0x2] %v976
    %v978 = vpack.c.bf16 %v976, %v976
    %v980 = vshrl.u32 %v978, 16
    %983 = vmatprep.subr.bf16.mxu0 %v677
    %984 = vmatpush1.bf16.msra.mxu0 %v676
    %985 = vmatprep.subr.bf16.mxu0 %v681
    %986 = vmatpush1.bf16.msra.mxu0 %v680
    %987 = vmatprep.subr.bf16.mxu0 %v685
    %988 = vmatpush1.bf16.msra.mxu0 %v684
    %989 = vmatprep.subr.bf16.mxu0 %v689
    %990 = vmatpush1.bf16.msra.mxu0 %v688
    %991 = vmatprep.subr.bf16.mxu0 %v693
    %992 = vmatpush1.bf16.msra.mxu0 %v692
    %993 = vmatprep.subr.bf16.mxu0 %v697
    %994 = vmatpush1.bf16.msra.mxu0 %v696
    %995 = vmatprep.subr.bf16.mxu0 %v701
    %996 = vmatpush1.bf16.msra.mxu0 %v700
    %997 = vmatprep.subr.bf16.mxu0 %v705
    %998 = vmatpush1.bf16.msra.mxu0 %v704
    %999 = vmatprep.subr.bf16.mxu0 0
    %1000 = vmatpush1.bf16.msra.mxu0 0
    %1001 = vmatprep.subr.bf16.mxu0 0
    %1002 = vmatpush1.bf16.msra.mxu0 0
    %1003 = vmatprep.subr.bf16.mxu0 0
    %1004 = vmatpush1.bf16.msra.mxu0 0
    %1005 = vmatprep.subr.bf16.mxu0 0
    %1006 = vmatpush1.bf16.msra.mxu0 0
    %1007 = vmatprep.subr.bf16.mxu0 0
    %1008 = vmatpush1.bf16.msra.mxu0 0
    %1009 = vmatprep.subr.bf16.mxu0 0
    %1010 = vmatpush1.bf16.msra.mxu0 0
    %1011 = vmatprep.subr.bf16.mxu0 0
    %1012 = vmatpush1.bf16.msra.mxu0 0
    %1013 = vmatprep.subr.bf16.mxu0 0
    %1014 = vmatpush1.bf16.msra.mxu0 0
    %1015 = vmatprep.mubr.bf16.mxu0 0
    %1016 = vmatmul.mubr.bf16.gmra.mrb[0].mxu0 %v980
    %v1017 = vpop.f32.mrb[0].mxu0
    %v1018 = vadd.f32 0.0, %v1017
    %v1019 = vpop.f32.mrb[0].mxu0
    %v1020 = vadd.f32 0.0, %v1019
    %v1021 = vpop.f32.mrb[0].mxu0
    %v1022 = vpop.f32.mrb[0].mxu0
    %1023 = vdwg.mxu0
    %1024 = vmatprep.subr.bf16.mxu0 %v679
    %1025 = vmatpush1.bf16.msra.mxu0 %v678
    %1026 = vmatprep.subr.bf16.mxu0 %v683
    %1027 = vmatpush1.bf16.msra.mxu0 %v682
    %1028 = vmatprep.subr.bf16.mxu0 %v687
    %1029 = vmatpush1.bf16.msra.mxu0 %v686
    %1030 = vmatprep.subr.bf16.mxu0 %v691
    %1031 = vmatpush1.bf16.msra.mxu0 %v690
    %1032 = vmatprep.subr.bf16.mxu0 %v695
    %1033 = vmatpush1.bf16.msra.mxu0 %v694
    %1034 = vmatprep.subr.bf16.mxu0 %v699
    %1035 = vmatpush1.bf16.msra.mxu0 %v698
    %1036 = vmatprep.subr.bf16.mxu0 %v703
    %1037 = vmatpush1.bf16.msra.mxu0 %v702
    %1038 = vmatprep.subr.bf16.mxu0 %v707
    %1039 = vmatpush1.bf16.msra.mxu0 %v706
    %1040 = vmatprep.subr.bf16.mxu0 0
    %1041 = vmatpush1.bf16.msra.mxu0 0
    %1042 = vmatprep.subr.bf16.mxu0 0
    %1043 = vmatpush1.bf16.msra.mxu0 0
    %1044 = vmatprep.subr.bf16.mxu0 0
    %1045 = vmatpush1.bf16.msra.mxu0 0
    %1046 = vmatprep.subr.bf16.mxu0 0
    %1047 = vmatpush1.bf16.msra.mxu0 0
    %1048 = vmatprep.subr.bf16.mxu0 0
    %1049 = vmatpush1.bf16.msra.mxu0 0
    %1050 = vmatprep.subr.bf16.mxu0 0
    %1051 = vmatpush1.bf16.msra.mxu0 0
    %1052 = vmatprep.subr.bf16.mxu0 0
    %1053 = vmatpush1.bf16.msra.mxu0 0
    %1054 = vmatprep.subr.bf16.mxu0 0
    %1055 = vmatpush1.bf16.msra.mxu0 0
    %1056 = vmatprep.mubr.bf16.mxu0 0
    %1057 = vmatmul.mubr.bf16.gmra.mrb[0].mxu0 %v980
    %v1058 = vpop.f32.mrb[0].mxu0
    %v1059 = vadd.f32 0.0, %v1058
    %v1060 = vpop.f32.mrb[0].mxu0
    %v1061 = vadd.f32 0.0, %v1060
    %v1062 = vpop.f32.mrb[0].mxu0
    %v1063 = vpop.f32.mrb[0].mxu0
    %1064 = vdwg.mxu0
    %v1069 = vrot.slane %v1018, 6
    %v1070 = vrot.slane %v1020, 6
    %v1071 = vrot.slane %v1059, 6
    %v1072 = vrot.slane %v1061, 6
    %v1077 = vadd.f32 %v501, %v1069
    %v1078 = vadd.f32 %v503, %v1070
    %v1079 = vadd.f32 %v542, %v1071
    %v1080 = vadd.f32 %v544, %v1072
    %v1081 = vxor.u32 %v1077, 2147483648
    %v1082 = vmul.f32 %v1081, 1.442695
    %v1083 = vpow.pop %v1082
    %v1084 = vadd.f32 %v1083, 1.0
    %v1085 = vrcp.pop %v1084
    %v1086 = vmul.f32 1.0, %v1085
    %v1087 = vxor.u32 %v1078, 2147483648
    %v1088 = vmul.f32 %v1087, 1.442695
    %v1089 = vpow.pop %v1088
    %v1090 = vadd.f32 %v1089, 1.0
    %v1091 = vrcp.pop %v1090
    %v1092 = vmul.f32 1.0, %v1091
    %v1093 = vtanh.pop %v1079
    %v1094 = vxor.u32 %v1080, 2147483648
    %v1095 = vmul.f32 %v1094, 1.442695
    %v1096 = vpow.pop %v1095
    %v1097 = vadd.f32 %v1096, 1.0
    %v1098 = vrcp.pop %v1097
    %v1099 = vmul.f32 1.0, %v1098
    %v1101 = vrot.slane %v974, 7
    %v1103 = vmul.f32 %v1092, %v1101
    %v1104 = vmul.f32 %v1086, %v1093
    %v1105 = vadd.f32 %v1103, %v1104
    %v1106 = vtanh.pop %v1105
    %v1107 = vmul.f32 %v1099, %v1106
    %1108 = vst [vmem:[%s6] sm:$0x4] %v1107
    %v1109 = vpack.c.bf16 %v1107, %v1107
    %v1111 = vrot.slane %v1109, 1
    %1113 = vmatprep.subr.bf16.mxu0 %v677
    %1114 = vmatpush1.bf16.msra.mxu0 %v676
    %1115 = vmatprep.subr.bf16.mxu0 %v681
    %1116 = vmatpush1.bf16.msra.mxu0 %v680
    %1117 = vmatprep.subr.bf16.mxu0 %v685
    %1118 = vmatpush1.bf16.msra.mxu0 %v684
    %1119 = vmatprep.subr.bf16.mxu0 %v689
    %1120 = vmatpush1.bf16.msra.mxu0 %v688
    %1121 = vmatprep.subr.bf16.mxu0 %v693
    %1122 = vmatpush1.bf16.msra.mxu0 %v692
    %1123 = vmatprep.subr.bf16.mxu0 %v697
    %1124 = vmatpush1.bf16.msra.mxu0 %v696
    %1125 = vmatprep.subr.bf16.mxu0 %v701
    %1126 = vmatpush1.bf16.msra.mxu0 %v700
    %1127 = vmatprep.subr.bf16.mxu0 %v705
    %1128 = vmatpush1.bf16.msra.mxu0 %v704
    %1129 = vmatprep.subr.bf16.mxu0 0
    %1130 = vmatpush1.bf16.msra.mxu0 0
    %1131 = vmatprep.subr.bf16.mxu0 0
    %1132 = vmatpush1.bf16.msra.mxu0 0
    %1133 = vmatprep.subr.bf16.mxu0 0
    %1134 = vmatpush1.bf16.msra.mxu0 0
    %1135 = vmatprep.subr.bf16.mxu0 0
    %1136 = vmatpush1.bf16.msra.mxu0 0
    %1137 = vmatprep.subr.bf16.mxu0 0
    %1138 = vmatpush1.bf16.msra.mxu0 0
    %1139 = vmatprep.subr.bf16.mxu0 0
    %1140 = vmatpush1.bf16.msra.mxu0 0
    %1141 = vmatprep.subr.bf16.mxu0 0
    %1142 = vmatpush1.bf16.msra.mxu0 0
    %1143 = vmatprep.subr.bf16.mxu0 0
    %1144 = vmatpush1.bf16.msra.mxu0 0
    %1145 = vmatprep.mubr.bf16.mxu0 0
    %1146 = vmatmul.mubr.bf16.gmra.mrb[0].mxu0 %v1111
    %v1147 = vpop.f32.mrb[0].mxu0
    %v1148 = vadd.f32 0.0, %v1147
    %v1149 = vpop.f32.mrb[0].mxu0
    %v1150 = vadd.f32 0.0, %v1149
    %v1151 = vpop.f32.mrb[0].mxu0
    %v1152 = vpop.f32.mrb[0].mxu0
    %1153 = vdwg.mxu0
    %1154 = vmatprep.subr.bf16.mxu0 %v679
    %1155 = vmatpush1.bf16.msra.mxu0 %v678
    %1156 = vmatprep.subr.bf16.mxu0 %v683
    %1157 = vmatpush1.bf16.msra.mxu0 %v682
    %1158 = vmatprep.subr.bf16.mxu0 %v687
    %1159 = vmatpush1.bf16.msra.mxu0 %v686
    %1160 = vmatprep.subr.bf16.mxu0 %v691
    %1161 = vmatpush1.bf16.msra.mxu0 %v690
    %1162 = vmatprep.subr.bf16.mxu0 %v695
    %1163 = vmatpush1.bf16.msra.mxu0 %v694
    %1164 = vmatprep.subr.bf16.mxu0 %v699
    %1165 = vmatpush1.bf16.msra.mxu0 %v698
    %1166 = vmatprep.subr.bf16.mxu0 %v703
    %1167 = vmatpush1.bf16.msra.mxu0 %v702
    %1168 = vmatprep.subr.bf16.mxu0 %v707
    %1169 = vmatpush1.bf16.msra.mxu0 %v706
    %1170 = vmatprep.subr.bf16.mxu0 0
    %1171 = vmatpush1.bf16.msra.mxu0 0
    %1172 = vmatprep.subr.bf16.mxu0 0
    %1173 = vmatpush1.bf16.msra.mxu0 0
    %1174 = vmatprep.subr.bf16.mxu0 0
    %1175 = vmatpush1.bf16.msra.mxu0 0
    %1176 = vmatprep.subr.bf16.mxu0 0
    %1177 = vmatpush1.bf16.msra.mxu0 0
    %1178 = vmatprep.subr.bf16.mxu0 0
    %1179 = vmatpush1.bf16.msra.mxu0 0
    %1180 = vmatprep.subr.bf16.mxu0 0
    %1181 = vmatpush1.bf16.msra.mxu0 0
    %1182 = vmatprep.subr.bf16.mxu0 0
    %1183 = vmatpush1.bf16.msra.mxu0 0
    %1184 = vmatprep.subr.bf16.mxu0 0
    %1185 = vmatpush1.bf16.msra.mxu0 0
    %1186 = vmatprep.mubr.bf16.mxu0 0
    %1187 = vmatmul.mubr.bf16.gmra.mrb[0].mxu0 %v1111
    %v1188 = vpop.f32.mrb[0].mxu0
    %v1189 = vadd.f32 0.0, %v1188
    %v1190 = vpop.f32.mrb[0].mxu0
    %v1191 = vadd.f32 0.0, %v1190
    %v1192 = vpop.f32.mrb[0].mxu0
    %v1193 = vpop.f32.mrb[0].mxu0
    %1194 = vdwg.mxu0
    %v1199 = vrot.slane %v1148, 5
    %v1200 = vrot.slane %v1150, 5
    %v1201 = vrot.slane %v1189, 5
    %v1202 = vrot.slane %v1191, 5
    %v1207 = vadd.f32 %v501, %v1199
    %v1208 = vadd.f32 %v503, %v1200
    %v1209 = vadd.f32 %v542, %v1201
    %v1210 = vadd.f32 %v544, %v1202
    %v1211 = vxor.u32 %v1207, 2147483648
    %v1212 = vmul.f32 %v1211, 1.442695
    %v1213 = vpow.pop %v1212
    %v1214 = vadd.f32 %v1213, 1.0
    %v1215 = vrcp.pop %v1214
    %v1216 = vmul.f32 1.0, %v1215
    %v1217 = vxor.u32 %v1208, 2147483648
    %v1218 = vmul.f32 %v1217, 1.442695
    %v1219 = vpow.pop %v1218
    %v1220 = vadd.f32 %v1219, 1.0
    %v1221 = vrcp.pop %v1220
    %v1222 = vmul.f32 1.0, %v1221
    %v1223 = vtanh.pop %v1209
    %v1224 = vxor.u32 %v1210, 2147483648
    %v1225 = vmul.f32 %v1224, 1.442695
    %v1226 = vpow.pop %v1225
    %v1227 = vadd.f32 %v1226, 1.0
    %v1228 = vrcp.pop %v1227
    %v1229 = vmul.f32 1.0, %v1228
    %v1231 = vrot.slane %v1105, 7
    %v1233 = vmul.f32 %v1222, %v1231
    %v1234 = vmul.f32 %v1216, %v1223
    %v1235 = vadd.f32 %v1233, %v1234
    %v1236 = vtanh.pop %v1235
    %v1237 = vmul.f32 %v1229, %v1236
    %1238 = vst [vmem:[%s6] sm:$0x8] %v1237
    %v1239 = vpack.c.bf16 %v1237, %v1237
    %v1241 = vshrl.u32 %v1239, 16
    %v1243 = vrot.slane %v1241, 1
    %1245 = vmatprep.subr.bf16.mxu0 %v677
    %1246 = vmatpush1.bf16.msra.mxu0 %v676
    %1247 = vmatprep.subr.bf16.mxu0 %v681
    %1248 = vmatpush1.bf16.msra.mxu0 %v680
    %1249 = vmatprep.subr.bf16.mxu0 %v685
    %1250 = vmatpush1.bf16.msra.mxu0 %v684
    %1251 = vmatprep.subr.bf16.mxu0 %v689
    %1252 = vmatpush1.bf16.msra.mxu0 %v688
    %1253 = vmatprep.subr.bf16.mxu0 %v693
    %1254 = vmatpush1.bf16.msra.mxu0 %v692
    %1255 = vmatprep.subr.bf16.mxu0 %v697
    %1256 = vmatpush1.bf16.msra.mxu0 %v696
    %1257 = vmatprep.subr.bf16.mxu0 %v701
    %1258 = vmatpush1.bf16.msra.mxu0 %v700
    %1259 = vmatprep.subr.bf16.mxu0 %v705
    %1260 = vmatpush1.bf16.msra.mxu0 %v704
    %1261 = vmatprep.subr.bf16.mxu0 0
    %1262 = vmatpush1.bf16.msra.mxu0 0
    %1263 = vmatprep.subr.bf16.mxu0 0
    %1264 = vmatpush1.bf16.msra.mxu0 0
    %1265 = vmatprep.subr.bf16.mxu0 0
    %1266 = vmatpush1.bf16.msra.mxu0 0
    %1267 = vmatprep.subr.bf16.mxu0 0
    %1268 = vmatpush1.bf16.msra.mxu0 0
    %1269 = vmatprep.subr.bf16.mxu0 0
    %1270 = vmatpush1.bf16.msra.mxu0 0
    %1271 = vmatprep.subr.bf16.mxu0 0
    %1272 = vmatpush1.bf16.msra.mxu0 0
    %1273 = vmatprep.subr.bf16.mxu0 0
    %1274 = vmatpush1.bf16.msra.mxu0 0
    %1275 = vmatprep.subr.bf16.mxu0 0
    %1276 = vmatpush1.bf16.msra.mxu0 0
    %1277 = vmatprep.mubr.bf16.mxu0 0
    %1278 = vmatmul.mubr.bf16.gmra.mrb[0].mxu0 %v1243
    %v1279 = vpop.f32.mrb[0].mxu0
    %v1280 = vadd.f32 0.0, %v1279
    %v1281 = vpop.f32.mrb[0].mxu0
    %v1282 = vadd.f32 0.0, %v1281
    %v1283 = vpop.f32.mrb[0].mxu0
    %v1284 = vpop.f32.mrb[0].mxu0
    %1285 = vdwg.mxu0
    %1286 = vmatprep.subr.bf16.mxu0 %v679
    %1287 = vmatpush1.bf16.msra.mxu0 %v678
    %1288 = vmatprep.subr.bf16.mxu0 %v683
    %1289 = vmatpush1.bf16.msra.mxu0 %v682
    %1290 = vmatprep.subr.bf16.mxu0 %v687
    %1291 = vmatpush1.bf16.msra.mxu0 %v686
    %1292 = vmatprep.subr.bf16.mxu0 %v691
    %1293 = vmatpush1.bf16.msra.mxu0 %v690
    %1294 = vmatprep.subr.bf16.mxu0 %v695
    %1295 = vmatpush1.bf16.msra.mxu0 %v694
    %1296 = vmatprep.subr.bf16.mxu0 %v699
    %1297 = vmatpush1.bf16.msra.mxu0 %v698
    %1298 = vmatprep.subr.bf16.mxu0 %v703
    %1299 = vmatpush1.bf16.msra.mxu0 %v702
    %1300 = vmatprep.subr.bf16.mxu0 %v707
    %1301 = vmatpush1.bf16.msra.mxu0 %v706
    %1302 = vmatprep.subr.bf16.mxu0 0
    %1303 = vmatpush1.bf16.msra.mxu0 0
    %1304 = vmatprep.subr.bf16.mxu0 0
    %1305 = vmatpush1.bf16.msra.mxu0 0
    %1306 = vmatprep.subr.bf16.mxu0 0
    %1307 = vmatpush1.bf16.msra.mxu0 0
    %1308 = vmatprep.subr.bf16.mxu0 0
    %1309 = vmatpush1.bf16.msra.mxu0 0
    %1310 = vmatprep.subr.bf16.mxu0 0
    %1311 = vmatpush1.bf16.msra.mxu0 0
    %1312 = vmatprep.subr.bf16.mxu0 0
    %1313 = vmatpush1.bf16.msra.mxu0 0
    %1314 = vmatprep.subr.bf16.mxu0 0
    %1315 = vmatpush1.bf16.msra.mxu0 0
    %1316 = vmatprep.subr.bf16.mxu0 0
    %1317 = vmatpush1.bf16.msra.mxu0 0
    %1318 = vmatprep.mubr.bf16.mxu0 0
    %1319 = vmatmul.mubr.bf16.gmra.mrb[0].mxu0 %v1243
    %v1320 = vpop.f32.mrb[0].mxu0
    %v1321 = vadd.f32 0.0, %v1320
    %v1322 = vpop.f32.mrb[0].mxu0
    %v1323 = vadd.f32 0.0, %v1322
    %v1324 = vpop.f32.mrb[0].mxu0
    %v1325 = vpop.f32.mrb[0].mxu0
    %1326 = vdwg.mxu0
    %v1331 = vrot.slane %v1280, 4
    %v1332 = vrot.slane %v1282, 4
    %v1333 = vrot.slane %v1321, 4
    %v1334 = vrot.slane %v1323, 4
    %v1339 = vadd.f32 %v501, %v1331
    %v1340 = vadd.f32 %v503, %v1332
    %v1341 = vadd.f32 %v542, %v1333
    %v1342 = vadd.f32 %v544, %v1334
    %v1343 = vxor.u32 %v1339, 2147483648
    %v1344 = vmul.f32 %v1343, 1.442695
    %v1345 = vpow.pop %v1344
    %v1346 = vadd.f32 %v1345, 1.0
    %v1347 = vrcp.pop %v1346
    %v1348 = vmul.f32 1.0, %v1347
    %v1349 = vxor.u32 %v1340, 2147483648
    %v1350 = vmul.f32 %v1349, 1.442695
    %v1351 = vpow.pop %v1350
    %v1352 = vadd.f32 %v1351, 1.0
    %v1353 = vrcp.pop %v1352
    %v1354 = vmul.f32 1.0, %v1353
    %v1355 = vtanh.pop %v1341
    %v1356 = vxor.u32 %v1342, 2147483648
    %v1357 = vmul.f32 %v1356, 1.442695
    %v1358 = vpow.pop %v1357
    %v1359 = vadd.f32 %v1358, 1.0
    %v1360 = vrcp.pop %v1359
    %v1361 = vmul.f32 1.0, %v1360
    %v1363 = vrot.slane %v1235, 7
    %v1365 = vmul.f32 %v1354, %v1363
    %v1366 = vmul.f32 %v1348, %v1355
    %v1367 = vadd.f32 %v1365, %v1366
    %v1368 = vtanh.pop %v1367
    %v1369 = vmul.f32 %v1361, %v1368
    %1370 = vst [vmem:[%s6] sm:$0x10] %v1369
    %v1371 = vpack.c.bf16 %v1369, %v1369
    %v1373 = vrot.slane %v1371, 2
    %1375 = vmatprep.subr.bf16.mxu0 %v677
    %1376 = vmatpush1.bf16.msra.mxu0 %v676
    %1377 = vmatprep.subr.bf16.mxu0 %v681
    %1378 = vmatpush1.bf16.msra.mxu0 %v680
    %1379 = vmatprep.subr.bf16.mxu0 %v685
    %1380 = vmatpush1.bf16.msra.mxu0 %v684
    %1381 = vmatprep.subr.bf16.mxu0 %v689
    %1382 = vmatpush1.bf16.msra.mxu0 %v688
    %1383 = vmatprep.subr.bf16.mxu0 %v693
    %1384 = vmatpush1.bf16.msra.mxu0 %v692
    %1385 = vmatprep.subr.bf16.mxu0 %v697
    %1386 = vmatpush1.bf16.msra.mxu0 %v696
    %1387 = vmatprep.subr.bf16.mxu0 %v701
    %1388 = vmatpush1.bf16.msra.mxu0 %v700
    %1389 = vmatprep.subr.bf16.mxu0 %v705
    %1390 = vmatpush1.bf16.msra.mxu0 %v704
    %1391 = vmatprep.subr.bf16.mxu0 0
    %1392 = vmatpush1.bf16.msra.mxu0 0
    %1393 = vmatprep.subr.bf16.mxu0 0
    %1394 = vmatpush1.bf16.msra.mxu0 0
    %1395 = vmatprep.subr.bf16.mxu0 0
    %1396 = vmatpush1.bf16.msra.mxu0 0
    %1397 = vmatprep.subr.bf16.mxu0 0
    %1398 = vmatpush1.bf16.msra.mxu0 0
    %1399 = vmatprep.subr.bf16.mxu0 0
    %1400 = vmatpush1.bf16.msra.mxu0 0
    %1401 = vmatprep.subr.bf16.mxu0 0
    %1402 = vmatpush1.bf16.msra.mxu0 0
    %1403 = vmatprep.subr.bf16.mxu0 0
    %1404 = vmatpush1.bf16.msra.mxu0 0
    %1405 = vmatprep.subr.bf16.mxu0 0
    %1406 = vmatpush1.bf16.msra.mxu0 0
    %1407 = vmatprep.mubr.bf16.mxu0 0
    %1408 = vmatmul.mubr.bf16.gmra.mrb[0].mxu0 %v1373
    %v1409 = vpop.f32.mrb[0].mxu0
    %v1410 = vadd.f32 0.0, %v1409
    %v1411 = vpop.f32.mrb[0].mxu0
    %v1412 = vadd.f32 0.0, %v1411
    %v1413 = vpop.f32.mrb[0].mxu0
    %v1414 = vpop.f32.mrb[0].mxu0
    %1415 = vdwg.mxu0
    %1416 = vmatprep.subr.bf16.mxu0 %v679
    %1417 = vmatpush1.bf16.msra.mxu0 %v678
    %1418 = vmatprep.subr.bf16.mxu0 %v683
    %1419 = vmatpush1.bf16.msra.mxu0 %v682
    %1420 = vmatprep.subr.bf16.mxu0 %v687
    %1421 = vmatpush1.bf16.msra.mxu0 %v686
    %1422 = vmatprep.subr.bf16.mxu0 %v691
    %1423 = vmatpush1.bf16.msra.mxu0 %v690
    %1424 = vmatprep.subr.bf16.mxu0 %v695
    %1425 = vmatpush1.bf16.msra.mxu0 %v694
    %1426 = vmatprep.subr.bf16.mxu0 %v699
    %1427 = vmatpush1.bf16.msra.mxu0 %v698
    %1428 = vmatprep.subr.bf16.mxu0 %v703
    %1429 = vmatpush1.bf16.msra.mxu0 %v702
    %1430 = vmatprep.subr.bf16.mxu0 %v707
    %1431 = vmatpush1.bf16.msra.mxu0 %v706
    %1432 = vmatprep.subr.bf16.mxu0 0
    %1433 = vmatpush1.bf16.msra.mxu0 0
    %1434 = vmatprep.subr.bf16.mxu0 0
    %1435 = vmatpush1.bf16.msra.mxu0 0
    %1436 = vmatprep.subr.bf16.mxu0 0
    %1437 = vmatpush1.bf16.msra.mxu0 0
    %1438 = vmatprep.subr.bf16.mxu0 0
    %1439 = vmatpush1.bf16.msra.mxu0 0
    %1440 = vmatprep.subr.bf16.mxu0 0
    %1441 = vmatpush1.bf16.msra.mxu0 0
    %1442 = vmatprep.subr.bf16.mxu0 0
    %1443 = vmatpush1.bf16.msra.mxu0 0
    %1444 = vmatprep.subr.bf16.mxu0 0
    %1445 = vmatpush1.bf16.msra.mxu0 0
    %1446 = vmatprep.subr.bf16.mxu0 0
    %1447 = vmatpush1.bf16.msra.mxu0 0
    %1448 = vmatprep.mubr.bf16.mxu0 0
    %1449 = vmatmul.mubr.bf16.gmra.mrb[0].mxu0 %v1373
    %v1450 = vpop.f32.mrb[0].mxu0
    %v1451 = vadd.f32 0.0, %v1450
    %v1452 = vpop.f32.mrb[0].mxu0
    %v1453 = vadd.f32 0.0, %v1452
    %v1454 = vpop.f32.mrb[0].mxu0
    %v1455 = vpop.f32.mrb[0].mxu0
    %1456 = vdwg.mxu0
    %v1461 = vrot.slane %v1410, 3
    %v1462 = vrot.slane %v1412, 3
    %v1463 = vrot.slane %v1451, 3
    %v1464 = vrot.slane %v1453, 3
    %v1469 = vadd.f32 %v501, %v1461
    %v1470 = vadd.f32 %v503, %v1462
    %v1471 = vadd.f32 %v542, %v1463
    %v1472 = vadd.f32 %v544, %v1464
    %v1473 = vxor.u32 %v1469, 2147483648
    %v1474 = vmul.f32 %v1473, 1.442695
    %v1475 = vpow.pop %v1474
    %v1476 = vadd.f32 %v1475, 1.0
    %v1477 = vrcp.pop %v1476
    %v1478 = vmul.f32 1.0, %v1477
    %v1479 = vxor.u32 %v1470, 2147483648
    %v1480 = vmul.f32 %v1479, 1.442695
    %v1481 = vpow.pop %v1480
    %v1482 = vadd.f32 %v1481, 1.0
    %v1483 = vrcp.pop %v1482
    %v1484 = vmul.f32 1.0, %v1483
    %v1485 = vtanh.pop %v1471
    %v1486 = vxor.u32 %v1472, 2147483648
    %v1487 = vmul.f32 %v1486, 1.442695
    %v1488 = vpow.pop %v1487
    %v1489 = vadd.f32 %v1488, 1.0
    %v1490 = vrcp.pop %v1489
    %v1491 = vmul.f32 1.0, %v1490
    %v1493 = vrot.slane %v1367, 7
    %v1495 = vmul.f32 %v1484, %v1493
    %v1496 = vmul.f32 %v1478, %v1485
    %v1497 = vadd.f32 %v1495, %v1496
    %v1498 = vtanh.pop %v1497
    %v1499 = vmul.f32 %v1491, %v1498
    %1500 = vst [vmem:[%s6] sm:$0x20] %v1499
    %v1501 = vpack.c.bf16 %v1499, %v1499
    %v1503 = vshrl.u32 %v1501, 16
    %v1505 = vrot.slane %v1503, 2
    %1507 = vmatprep.subr.bf16.mxu0 %v677
    %1508 = vmatpush1.bf16.msra.mxu0 %v676
    %1509 = vmatprep.subr.bf16.mxu0 %v681
    %1510 = vmatpush1.bf16.msra.mxu0 %v680
    %1511 = vmatprep.subr.bf16.mxu0 %v685
    %1512 = vmatpush1.bf16.msra.mxu0 %v684
    %1513 = vmatprep.subr.bf16.mxu0 %v689
    %1514 = vmatpush1.bf16.msra.mxu0 %v688
    %1515 = vmatprep.subr.bf16.mxu0 %v693
    %1516 = vmatpush1.bf16.msra.mxu0 %v692
    %1517 = vmatprep.subr.bf16.mxu0 %v697
    %1518 = vmatpush1.bf16.msra.mxu0 %v696
    %1519 = vmatprep.subr.bf16.mxu0 %v701
    %1520 = vmatpush1.bf16.msra.mxu0 %v700
    %1521 = vmatprep.subr.bf16.mxu0 %v705
    %1522 = vmatpush1.bf16.msra.mxu0 %v704
    %1523 = vmatprep.subr.bf16.mxu0 0
    %1524 = vmatpush1.bf16.msra.mxu0 0
    %1525 = vmatprep.subr.bf16.mxu0 0
    %1526 = vmatpush1.bf16.msra.mxu0 0
    %1527 = vmatprep.subr.bf16.mxu0 0
    %1528 = vmatpush1.bf16.msra.mxu0 0
    %1529 = vmatprep.subr.bf16.mxu0 0
    %1530 = vmatpush1.bf16.msra.mxu0 0
    %1531 = vmatprep.subr.bf16.mxu0 0
    %1532 = vmatpush1.bf16.msra.mxu0 0
    %1533 = vmatprep.subr.bf16.mxu0 0
    %1534 = vmatpush1.bf16.msra.mxu0 0
    %1535 = vmatprep.subr.bf16.mxu0 0
    %1536 = vmatpush1.bf16.msra.mxu0 0
    %1537 = vmatprep.subr.bf16.mxu0 0
    %1538 = vmatpush1.bf16.msra.mxu0 0
    %1539 = vmatprep.mubr.bf16.mxu0 0
    %1540 = vmatmul.mubr.bf16.gmra.mrb[0].mxu0 %v1505
    %v1541 = vpop.f32.mrb[0].mxu0
    %v1542 = vadd.f32 0.0, %v1541
    %v1543 = vpop.f32.mrb[0].mxu0
    %v1544 = vadd.f32 0.0, %v1543
    %v1545 = vpop.f32.mrb[0].mxu0
    %v1546 = vpop.f32.mrb[0].mxu0
    %1547 = vdwg.mxu0
    %1548 = vmatprep.subr.bf16.mxu0 %v679
    %1549 = vmatpush1.bf16.msra.mxu0 %v678
    %1550 = vmatprep.subr.bf16.mxu0 %v683
    %1551 = vmatpush1.bf16.msra.mxu0 %v682
    %1552 = vmatprep.subr.bf16.mxu0 %v687
    %1553 = vmatpush1.bf16.msra.mxu0 %v686
    %1554 = vmatprep.subr.bf16.mxu0 %v691
    %1555 = vmatpush1.bf16.msra.mxu0 %v690
    %1556 = vmatprep.subr.bf16.mxu0 %v695
    %1557 = vmatpush1.bf16.msra.mxu0 %v694
    %1558 = vmatprep.subr.bf16.mxu0 %v699
    %1559 = vmatpush1.bf16.msra.mxu0 %v698
    %1560 = vmatprep.subr.bf16.mxu0 %v703
    %1561 = vmatpush1.bf16.msra.mxu0 %v702
    %1562 = vmatprep.subr.bf16.mxu0 %v707
    %1563 = vmatpush1.bf16.msra.mxu0 %v706
    %1564 = vmatprep.subr.bf16.mxu0 0
    %1565 = vmatpush1.bf16.msra.mxu0 0
    %1566 = vmatprep.subr.bf16.mxu0 0
    %1567 = vmatpush1.bf16.msra.mxu0 0
    %1568 = vmatprep.subr.bf16.mxu0 0
    %1569 = vmatpush1.bf16.msra.mxu0 0
    %1570 = vmatprep.subr.bf16.mxu0 0
    %1571 = vmatpush1.bf16.msra.mxu0 0
    %1572 = vmatprep.subr.bf16.mxu0 0
    %1573 = vmatpush1.bf16.msra.mxu0 0
    %1574 = vmatprep.subr.bf16.mxu0 0
    %1575 = vmatpush1.bf16.msra.mxu0 0
    %1576 = vmatprep.subr.bf16.mxu0 0
    %1577 = vmatpush1.bf16.msra.mxu0 0
    %1578 = vmatprep.subr.bf16.mxu0 0
    %1579 = vmatpush1.bf16.msra.mxu0 0
    %1580 = vmatprep.mubr.bf16.mxu0 0
    %1581 = vmatmul.mubr.bf16.gmra.mrb[0].mxu0 %v1505
    %v1582 = vpop.f32.mrb[0].mxu0
    %v1583 = vadd.f32 0.0, %v1582
    %v1584 = vpop.f32.mrb[0].mxu0
    %v1585 = vadd.f32 0.0, %v1584
    %v1586 = vpop.f32.mrb[0].mxu0
    %v1587 = vpop.f32.mrb[0].mxu0
    %1588 = vdwg.mxu0
    %v1593 = vrot.slane %v1542, 2
    %v1594 = vrot.slane %v1544, 2
    %v1595 = vrot.slane %v1583, 2
    %v1596 = vrot.slane %v1585, 2
    %v1601 = vadd.f32 %v501, %v1593
    %v1602 = vadd.f32 %v503, %v1594
    %v1603 = vadd.f32 %v542, %v1595
    %v1604 = vadd.f32 %v544, %v1596
    %v1605 = vxor.u32 %v1601, 2147483648
    %v1606 = vmul.f32 %v1605, 1.442695
    %v1607 = vpow.pop %v1606
    %v1608 = vadd.f32 %v1607, 1.0
    %v1609 = vrcp.pop %v1608
    %v1610 = vmul.f32 1.0, %v1609
    %v1611 = vxor.u32 %v1602, 2147483648
    %v1612 = vmul.f32 %v1611, 1.442695
    %v1613 = vpow.pop %v1612
    %v1614 = vadd.f32 %v1613, 1.0
    %v1615 = vrcp.pop %v1614
    %v1616 = vmul.f32 1.0, %v1615
    %v1617 = vtanh.pop %v1603
    %v1618 = vxor.u32 %v1604, 2147483648
    %v1619 = vmul.f32 %v1618, 1.442695
    %v1620 = vpow.pop %v1619
    %v1621 = vadd.f32 %v1620, 1.0
    %v1622 = vrcp.pop %v1621
    %v1623 = vmul.f32 1.0, %v1622
    %v1625 = vrot.slane %v1497, 7
    %v1627 = vmul.f32 %v1616, %v1625
    %v1628 = vmul.f32 %v1610, %v1617
    %v1629 = vadd.f32 %v1627, %v1628
    %v1630 = vtanh.pop %v1629
    %v1631 = vmul.f32 %v1623, %v1630
    %1632 = vst [vmem:[%s6] sm:$0x40] %v1631
    %v1633 = vpack.c.bf16 %v1631, %v1631
    %v1635 = vrot.slane %v1633, 3
    %1637 = vmatprep.subr.bf16.mxu0 %v677
    %1638 = vmatpush1.bf16.msra.mxu0 %v676
    %1639 = vmatprep.subr.bf16.mxu0 %v681
    %1640 = vmatpush1.bf16.msra.mxu0 %v680
    %1641 = vmatprep.subr.bf16.mxu0 %v685
    %1642 = vmatpush1.bf16.msra.mxu0 %v684
    %1643 = vmatprep.subr.bf16.mxu0 %v689
    %1644 = vmatpush1.bf16.msra.mxu0 %v688
    %1645 = vmatprep.subr.bf16.mxu0 %v693
    %1646 = vmatpush1.bf16.msra.mxu0 %v692
    %1647 = vmatprep.subr.bf16.mxu0 %v697
    %1648 = vmatpush1.bf16.msra.mxu0 %v696
    %1649 = vmatprep.subr.bf16.mxu0 %v701
    %1650 = vmatpush1.bf16.msra.mxu0 %v700
    %1651 = vmatprep.subr.bf16.mxu0 %v705
    %1652 = vmatpush1.bf16.msra.mxu0 %v704
    %1653 = vmatprep.subr.bf16.mxu0 0
    %1654 = vmatpush1.bf16.msra.mxu0 0
    %1655 = vmatprep.subr.bf16.mxu0 0
    %1656 = vmatpush1.bf16.msra.mxu0 0
    %1657 = vmatprep.subr.bf16.mxu0 0
    %1658 = vmatpush1.bf16.msra.mxu0 0
    %1659 = vmatprep.subr.bf16.mxu0 0
    %1660 = vmatpush1.bf16.msra.mxu0 0
    %1661 = vmatprep.subr.bf16.mxu0 0
    %1662 = vmatpush1.bf16.msra.mxu0 0
    %1663 = vmatprep.subr.bf16.mxu0 0
    %1664 = vmatpush1.bf16.msra.mxu0 0
    %1665 = vmatprep.subr.bf16.mxu0 0
    %1666 = vmatpush1.bf16.msra.mxu0 0
    %1667 = vmatprep.subr.bf16.mxu0 0
    %1668 = vmatpush1.bf16.msra.mxu0 0
    %1669 = vmatprep.mubr.bf16.mxu0 0
    %1670 = vmatmul.mubr.bf16.gmra.mrb[0].mxu0 %v1635
    %v1671 = vpop.f32.mrb[0].mxu0
    %v1672 = vadd.f32 0.0, %v1671
    %v1673 = vpop.f32.mrb[0].mxu0
    %v1674 = vadd.f32 0.0, %v1673
    %v1675 = vpop.f32.mrb[0].mxu0
    %v1676 = vpop.f32.mrb[0].mxu0
    %1677 = vdwg.mxu0
    %1678 = vmatprep.subr.bf16.mxu0 %v679
    %1679 = vmatpush1.bf16.msra.mxu0 %v678
    %1680 = vmatprep.subr.bf16.mxu0 %v683
    %1681 = vmatpush1.bf16.msra.mxu0 %v682
    %1682 = vmatprep.subr.bf16.mxu0 %v687
    %1683 = vmatpush1.bf16.msra.mxu0 %v686
    %1684 = vmatprep.subr.bf16.mxu0 %v691
    %1685 = vmatpush1.bf16.msra.mxu0 %v690
    %1686 = vmatprep.subr.bf16.mxu0 %v695
    %1687 = vmatpush1.bf16.msra.mxu0 %v694
    %1688 = vmatprep.subr.bf16.mxu0 %v699
    %1689 = vmatpush1.bf16.msra.mxu0 %v698
    %1690 = vmatprep.subr.bf16.mxu0 %v703
    %1691 = vmatpush1.bf16.msra.mxu0 %v702
    %1692 = vmatprep.subr.bf16.mxu0 %v707
    %1693 = vmatpush1.bf16.msra.mxu0 %v706
    %1694 = vmatprep.subr.bf16.mxu0 0
    %1695 = vmatpush1.bf16.msra.mxu0 0
    %1696 = vmatprep.subr.bf16.mxu0 0
    %1697 = vmatpush1.bf16.msra.mxu0 0
    %1698 = vmatprep.subr.bf16.mxu0 0
    %1699 = vmatpush1.bf16.msra.mxu0 0
    %1700 = vmatprep.subr.bf16.mxu0 0
    %1701 = vmatpush1.bf16.msra.mxu0 0
    %1702 = vmatprep.subr.bf16.mxu0 0
    %1703 = vmatpush1.bf16.msra.mxu0 0
    %1704 = vmatprep.subr.bf16.mxu0 0
    %1705 = vmatpush1.bf16.msra.mxu0 0
    %1706 = vmatprep.subr.bf16.mxu0 0
    %1707 = vmatpush1.bf16.msra.mxu0 0
    %1708 = vmatprep.subr.bf16.mxu0 0
    %1709 = vmatpush1.bf16.msra.mxu0 0
    %1710 = vmatprep.mubr.bf16.mxu0 0
    %1711 = vmatmul.mubr.bf16.gmra.mrb[0].mxu0 %v1635
    %v1712 = vpop.f32.mrb[0].mxu0
    %v1713 = vadd.f32 0.0, %v1712
    %v1714 = vpop.f32.mrb[0].mxu0
    %v1715 = vadd.f32 0.0, %v1714
    %v1716 = vpop.f32.mrb[0].mxu0
    %v1717 = vpop.f32.mrb[0].mxu0
    %1718 = vdwg.mxu0
    %v1723 = vrot.slane %v1672, 1
    %v1724 = vrot.slane %v1674, 1
    %v1725 = vrot.slane %v1713, 1
    %v1726 = vrot.slane %v1715, 1
    %v1731 = vadd.f32 %v501, %v1723
    %v1732 = vadd.f32 %v503, %v1724
    %v1733 = vadd.f32 %v542, %v1725
    %v1734 = vadd.f32 %v544, %v1726
    %v1735 = vxor.u32 %v1731, 2147483648
    %v1736 = vmul.f32 %v1735, 1.442695
    %v1737 = vpow.pop %v1736
    %v1738 = vadd.f32 %v1737, 1.0
    %v1739 = vrcp.pop %v1738
    %v1740 = vmul.f32 1.0, %v1739
    %v1741 = vxor.u32 %v1732, 2147483648
    %v1742 = vmul.f32 %v1741, 1.442695
    %v1743 = vpow.pop %v1742
    %v1744 = vadd.f32 %v1743, 1.0
    %v1745 = vrcp.pop %v1744
    %v1746 = vmul.f32 1.0, %v1745
    %v1747 = vtanh.pop %v1733
    %v1748 = vxor.u32 %v1734, 2147483648
    %v1749 = vmul.f32 %v1748, 1.442695
    %v1750 = vpow.pop %v1749
    %v1751 = vadd.f32 %v1750, 1.0
    %v1752 = vrcp.pop %v1751
    %v1753 = vmul.f32 1.0, %v1752
    %v1755 = vrot.slane %v1629, 7
    %v1757 = vmul.f32 %v1746, %v1755
    %v1758 = vmul.f32 %v1740, %v1747
    %v1759 = vadd.f32 %v1757, %v1758
    %v1760 = vtanh.pop %v1759
    %v1761 = vmul.f32 %v1753, %v1760
    %1762 = vst [vmem:[%s6] sm:$0x80] %v1761
    %1763 = vst [vmem:[%s7 - $0x7] sm:$0x80] %v1759
    // Predicated region
    $region38: #{rnn_forward.1} parent=1 // pred_check
      _
    $region39: #{rnn_forward.1} parent=1 // pred_check_branch
      %1765 = sbr.rel (0) target = $region41
    $region40: #{rnn_forward.1} parent=1 // pred_region
      _
    $region41: #{rnn_forward.1} parent=1 // pred_fallthru
      _
    // Predicated region
    $region42: #{rnn_forward.1} parent=1 // pred_check
      _
    $region43: #{rnn_forward.1} parent=1 // pred_check_branch
      %1767 = sbr.rel (0) target = $region45
    $region44: #{rnn_forward.1} parent=1 // pred_region
      _
    $region45: #{rnn_forward.1} parent=1 // pred_fallthru
      _
    // Predicated region
    $region46: #{rnn_forward.1} parent=1 // pred_check
      _
    $region47: #{rnn_forward.1} parent=1 // pred_check_branch
      %1769 = sbr.rel (0) target = $region49
    $region48: #{rnn_forward.1} parent=1 // pred_region
      _
    $region49: #{rnn_forward.1} parent=1 // pred_fallthru
      _
    // Predicated region
    $region50: #{rnn_forward.1} parent=1 // pred_check
      _
    $region51: #{rnn_forward.1} parent=1 // pred_check_branch
      %1771 = sbr.rel (0) target = $region53
    $region52: #{rnn_forward.1} parent=1 // pred_region
      _
    $region53: #{rnn_forward.1} parent=1 // pred_fallthru
      _
    %1772 = vsyncpa [#allocation3], 1
    %1773 = vsyncpa [#allocation5], 1

</llo_original>
